<compile_context>
chip_gen: v7x
topology: tpu7x:2x2x1
jax: 0.10.0
libtpu: 0.0.40
codegen_flags: <defaults>
</compile_context>

<pallas_src>
import jax
import jax.numpy as jnp
from jax.experimental import pallas as pl
from jax.experimental.pallas import tpu as pltpu

INTERMEDIATE_LENGTH = 24
ZETA = 1

_LANE = 128
_MAX_TILE_BATCH_ROWS = 32768           # batch rows per grid step (multiple of 128)
_MAX_TILE_ROWS = _MAX_TILE_BATCH_ROWS // _LANE  # repacked rows per grid step (256)


def _ffn_kernel(x_ref, wbd_ref, b_ref, o_ref):
    """One batch tile of  out = x @ W^T + b  for Linear(24, 1), MXU form.

    x_ref:   (tr, 128*K)  repacked input rows (VMEM): row r packs 128
             consecutive batch rows of x, each K=24 features, contiguously.
    wbd_ref: (128*K, 128) block-diagonal weight (VMEM, resident, f32).
    b_ref:   (1,)         bias scalar (SMEM).
    o_ref:   (tr, 128)    lane-dense output tile (VMEM).
    """
    x = x_ref[...].astype(jnp.float32)   # upcast after the load (no-op for f32)
    acc = jnp.dot(x, wbd_ref[...], preferred_element_type=jnp.float32)
    o_ref[...] = (acc + b_ref[0]).astype(o_ref.dtype)


def _round_up(n, m):
    return ((n + m - 1) // m) * m


def output_module_forward(x, weight, bias):
    """Pallas equivalent of OutputModule.forward (nn.Linear(24, 1)).

    x:      (B, 24)
    weight: (1, 24)   (PyTorch layout: (out_features, in_features))
    bias:   (1,)
    returns (B, 1) float32
    """
    B, K = x.shape
    assert K == INTERMEDIATE_LENGTH
    assert weight.shape == (ZETA, K) and ZETA == 1

    # Pad the batch to a multiple of 128 so the repacked view is exact and
    # every grid step's input DMA is a single contiguous, aligned copy.
    b_pad = _round_up(max(B, _LANE), _LANE)
    if b_pad != B:
        x = jnp.pad(x, ((0, b_pad - B), (0, 0)))

    rows = b_pad // _LANE                       # rows of the repacked view
    x2d = x.reshape(rows, _LANE * K)            # row-major view: free reshape

    # Block-diagonal weight: Wbd[i*K + k, j] = delta_ij * w[k]  -> (3072, 128).
    wbd = jnp.kron(jnp.eye(_LANE, dtype=jnp.float32),
                   weight.astype(jnp.float32).reshape(K, 1))

    tile_rows = min(_MAX_TILE_ROWS, rows)       # either 256 (mult. of 8) or full
    num_tiles = pl.cdiv(rows, tile_rows)

    cost = pl.CostEstimate(
        flops=2 * b_pad * K,
        transcendentals=0,
        bytes_accessed=(b_pad * K * x.dtype.itemsize    # input stream
                        + b_pad * 4                      # output stream
                        + wbd.size * 4),                 # resident weight
    )

    out2d = pl.pallas_call(
        _ffn_kernel,
        out_shape=jax.ShapeDtypeStruct((rows, _LANE), jnp.float32),
        grid=(num_tiles,),
        in_specs=[
            # Contiguous, lane-dense batch tile -> double-buffered HBM pipeline.
            pl.BlockSpec((tile_rows, _LANE * K), lambda i: (i, 0)),
            # Block-diagonal weight: same block every step (stays resident).
            pl.BlockSpec((_LANE * K, _LANE), lambda i: (0, 0)),
            # Bias as an SMEM scalar.
            pl.BlockSpec(memory_space=pltpu.MemorySpace.SMEM),
        ],
        # Lane-dense output tile: batch on the 128-lane axis, unmasked stores.
        out_specs=pl.BlockSpec((tile_rows, _LANE), lambda i: (i, 0)),
        compiler_params=pltpu.CompilerParams(
            dimension_semantics=("parallel",),
        ),
        cost_estimate=cost,
    )(x2d, wbd, bias.astype(jnp.float32))

    # Undo the lane-dense packing; drop rows added by the 128-padding.
    return out2d.reshape(-1)[:B].reshape(B, ZETA)


if __name__ == "__main__":
    key = jax.random.PRNGKey(0)
    k_x, k_w, k_b, k_x2 = jax.random.split(key, 4)

    # Deterministic init mimicking nn.Linear: U(-1/sqrt(fan_in), 1/sqrt(fan_in)).
    bound = 1.0 / (INTERMEDIATE_LENGTH ** 0.5)
    weight = jax.random.uniform(
        k_w, (ZETA, INTERMEDIATE_LENGTH), minval=-bound, maxval=bound,
        dtype=jnp.float32)
    bias = jax.random.uniform(
        k_b, (ZETA,), minval=-bound, maxval=bound, dtype=jnp.float32)

    # Small demo batch (exercises the pad-to-128 path).
    B1 = 8
    x1 = jax.random.normal(k_x, (B1, INTERMEDIATE_LENGTH), dtype=jnp.float32)
    out1 = jax.block_until_ready(output_module_forward(x1, weight, bias))
    ref1 = x1 @ weight.T + bias
    assert out1.shape == (B1, ZETA)
    assert jnp.allclose(out1, ref1, atol=1e-5, rtol=1e-5)

    # Slightly larger, non-multiple-of-128 batch (exercises padding + multi-row tile).
    B2 = 300
    x2 = jax.random.normal(k_x2, (B2, INTERMEDIATE_LENGTH), dtype=jnp.float32)
    out2 = jax.block_until_ready(output_module_forward(x2, weight, bias))
    ref2 = x2 @ weight.T + bias
    assert out2.shape == (B2, ZETA)
    assert jnp.allclose(out2, ref2, atol=1e-5, rtol=1e-5)

    print("KERNEL_OK")
</pallas_src>

<mosaic_0001>
module attributes {stable_mosaic.version = 11 : i64} {
  func.func @_ffn_kernel(%arg0: i32, %arg1: memref<1x3072xf32, #tpu.memory_space<vmem>>, %arg2: memref<3072x128xf32, #tpu.memory_space<vmem>>, %arg3: memref<1xf32, #tpu.memory_space<smem>>, %arg4: memref<1x128xf32, #tpu.memory_space<vmem>>) attributes {dimension_semantics = [#tpu.dimension_semantics<parallel>], iteration_bounds = array<i64: 1>, scalar_prefetch = 0 : i64, scratch_operands = 0 : i64, tpu.core_type = #tpu.core_type<tc>, window_params = [{transform_indices = @transform_0, window_bounds = array<i64: 1, 3072>}, {pipeline_mode = #tpu.pipeline_mode<synchronous>, transform_indices = @transform_1, window_bounds = array<i64: 3072, 128>}, {transform_indices = @transform_2, window_bounds = array<i64: 1>}, {transform_indices = @transform_3, window_bounds = array<i64: 1, 128>}]} {
    %c0 = arith.constant 0 : index
    %c0_0 = arith.constant 0 : index
    %0 = vector.load %arg1[%c0, %c0_0] : memref<1x3072xf32, #tpu.memory_space<vmem>>, vector<1x3072xf32>
    %c0_1 = arith.constant 0 : index
    %c0_2 = arith.constant 0 : index
    %1 = vector.load %arg2[%c0_1, %c0_2] : memref<3072x128xf32, #tpu.memory_space<vmem>>, vector<3072x128xf32>
    %cst = arith.constant dense<0.000000e+00> : vector<1x128xf32>
    %2 = tpu.matmul %0, %1, %cst {dimension_numbers = #tpu.dot_dimension_numbers<[1], [0], [0], [1], [0, 0, 1, 1], [], []>} : vector<1x3072xf32>, vector<3072x128xf32>, vector<1x128xf32> -> vector<1x128xf32>
    %c0_3 = arith.constant 0 : index
    %3 = memref.load %arg3[%c0_3] : memref<1xf32, #tpu.memory_space<smem>>
    %4 = vector.broadcast %3 : f32 to vector<1x128xf32>
    %5 = arith.addf %2, %4 : vector<1x128xf32>
    %c0_4 = arith.constant 0 : index
    %c0_5 = arith.constant 0 : index
    %6 = vector.load %arg4[%c0_4, %c0_5] : memref<1x128xf32, #tpu.memory_space<vmem>>, vector<1x128xf32>
    tpu.vector_store %arg4[%c0_4, %c0_5], %5 {strides = array<i32>} : memref<1x128xf32, #tpu.memory_space<vmem>>, vector<1x128xf32>,
    return
  }
  func.func @transform_0(%arg0: i32) -> (i32, i32) {
    %c0_i32 = arith.constant 0 : i32
    %c0_i32_0 = arith.constant 0 : i32
    return %arg0, %c0_i32 : i32, i32
  }
  func.func @transform_1(%arg0: i32) -> (i32, i32) {
    %c0_i32 = arith.constant 0 : i32
    %c0_i32_0 = arith.constant 0 : i32
    %c0_i32_1 = arith.constant 0 : i32
    return %c0_i32, %c0_i32_0 : i32, i32
  }
  func.func @transform_2(%arg0: i32) -> i32 {
    %c0_i32 = arith.constant 0 : i32
    %c0_i32_0 = arith.constant 0 : i32
    return %c0_i32 : i32
  }
  func.func @transform_3(%arg0: i32) -> (i32, i32) {
    %c0_i32 = arith.constant 0 : i32
    %c0_i32_0 = arith.constant 0 : i32
    return %arg0, %c0_i32 : i32, i32
  }
}

</mosaic_0001>

<llo_original>
// kernel: tpu_custom_call.1
$region0: #{tpu_custom_call.1}
  #allocation0 [shape = 'u32[]', space=smem, size = 0x4, offset = 0x4, fixed_abs, tag = 'smem constant byte address 0x4 - core index']
  #allocation1 [shape = 'u32[144,128]{1,0:T(1,128)}', space=vmem, size = 0x12000, scoped, tag = 'internal scratch']
  #allocation2 [shape = 'f32[1]{0:T(128)S(6)}', space=smem, size = 0x200, scoped, tag = 'scoped memory for tpu_custom_call.1']
  %s0 = inlined_call_operand.hbm [shape: f32[1,3072], index: 0, kind: input, shape index: {}]
  %s1 = inlined_call_operand.hbm [shape: f32[3072,128], index: 1, kind: input, shape index: {}]
  %s2 = inlined_call_operand.<no memory space> [shape: f32[1], index: 2, kind: input, shape index: {}]
  %s3 = inlined_call_operand.hbm [shape: f32[1,128], index: 3, kind: output, shape index: {}]
  %s4 = sld [smem:[#allocation0]]
  $region30: #{tpu_custom_call.1} parent=0
    _
  %s6 = ssub.s32 1, %s4
  %s7 = scalar_select 0, %s6, %s4
  %8 = sst [smem:[#allocation2]] %s2
  $region1: #{tpu_custom_call.1} parent=0
    #allocation3 [shape = 'u8[12288]{0}', space=vmem, size = 0x3000, scoped, tag = 'input window, operand 0, single buffered']
    #allocation4 [shape = 's32[1]{0}', space=sflag, size = 0x4, scoped, tag = 'scoped memory for tpu_custom_call.1']
    #allocation5 [shape = 's32[1]{0}', space=sflag, size = 0x4, scoped, tag = 'scoped memory for tpu_custom_call.1']
    #allocation6 [shape = 'u8[1572864]{0}', space=vmem, size = 0x180000, scoped, tag = 'input window, operand 1, single buffered']
    #allocation7 [shape = 's32[1]{0}', space=sflag, size = 0x4, scoped, tag = 'scoped memory for tpu_custom_call.1']
    #allocation8 [shape = 'u8[512]{0}', space=vmem, size = 0x400, scoped, tag = 'output window, operand 0, single buffered']
    %9 = vsyncpa [#allocation4], 0
    %10 = vsyncpa [#allocation7], 0
    %11 = vsyncpa [#allocation5], 0
    // Predicated region
    $region2: #{tpu_custom_call.1} parent=1 // pred_check
      _
    $region3: #{tpu_custom_call.1} parent=1 // pred_check_branch
      %13 = sbr.rel (0) target = $region5
    $region4: #{tpu_custom_call.1} parent=1 // pred_region
      %s15 = ssub.s32 384, 384
      %16 = vsyncadd [#allocation4], %s15
      %s18 = sshll.u32 [#allocation3], 4
      %s19 = int_to_ptr.vmem [resolvable:$true] %s18
      %21 = dma.hbm_to_vmem [thread:$0]  %s0, 384, %s19, [#allocation4]
    $region5: #{tpu_custom_call.1} parent=1 // pred_fallthru
      _
    // Predicated region
    $region6: #{tpu_custom_call.1} parent=1 // pred_check
      _
    $region7: #{tpu_custom_call.1} parent=1 // pred_check_branch
      %23 = sbr.rel (0) target = $region9
    $region8: #{tpu_custom_call.1} parent=1 // pred_region
      %s25 = ssub.s32 49152, 49152
      %26 = vsyncadd [#allocation7], %s25
      %s27 = sshll.u32 [#allocation6], 4
      %s28 = int_to_ptr.vmem [resolvable:$true] %s27
      %33 = dma.hbm_to_vmem [thread:$0]  %s1, 49152, %s28, [#allocation7], 128, 128, 8
    $region9: #{tpu_custom_call.1} parent=1 // pred_fallthru
      _
    // Predicated region
    $region10: #{tpu_custom_call.1} parent=1 // pred_check
      _
    $region11: #{tpu_custom_call.1} parent=1 // pred_check_branch
      %35 = sbr.rel (0) target = $region13
    $region12: #{tpu_custom_call.1} parent=1 // pred_region
      _
    $region13: #{tpu_custom_call.1} parent=1 // pred_fallthru
      _
    // Predicated region
    $region14: #{tpu_custom_call.1} parent=1 // pred_check
      _
    $region15: #{tpu_custom_call.1} parent=1 // pred_check_branch
      %37 = sbr.rel (0) target = $region17
    $region16: #{tpu_custom_call.1} parent=1 // pred_region
      %38 = dma.done [#allocation4], 384
    $region17: #{tpu_custom_call.1} parent=1 // pred_fallthru
      _
    // Predicated region
    $region18: #{tpu_custom_call.1} parent=1 // pred_check
      _
    $region19: #{tpu_custom_call.1} parent=1 // pred_check_branch
      %40 = sbr.rel (0) target = $region21
    $region20: #{tpu_custom_call.1} parent=1 // pred_region
      %41 = dma.done [#allocation7], 49152
    $region21: #{tpu_custom_call.1} parent=1 // pred_fallthru
      _
    %v42 = vld [vmem:[#allocation3] sm:$0xff]
    %v43 = vld [vmem:[#allocation3 + $0x8] sm:$0xff]
    %v44 = vld [vmem:[#allocation3 + $0x10] sm:$0xff]
    %v45 = vld [vmem:[#allocation6] sm:$0xff]
    %v46 = vld [vmem:[#allocation6 + $0x8] sm:$0xff]
    %v47 = vld [vmem:[#allocation6 + $0x10] sm:$0xff]
    %v48 = vld [vmem:[#allocation6 + $0x18] sm:$0xff]
    %v49 = vld [vmem:[#allocation6 + $0x20] sm:$0xff]
    %v50 = vld [vmem:[#allocation6 + $0x28] sm:$0xff]
    %v51 = vld [vmem:[#allocation6 + $0x30] sm:$0xff]
    %v52 = vld [vmem:[#allocation6 + $0x38] sm:$0xff]
    %v53 = vld [vmem:[#allocation6 + $0x40] sm:$0xff]
    %v54 = vld [vmem:[#allocation6 + $0x48] sm:$0xff]
    %v55 = vld [vmem:[#allocation6 + $0x50] sm:$0xff]
    %v56 = vld [vmem:[#allocation6 + $0x58] sm:$0xff]
    %v57 = vld [vmem:[#allocation6 + $0x60] sm:$0xff]
    %v58 = vld [vmem:[#allocation6 + $0x68] sm:$0xff]
    %v59 = vld [vmem:[#allocation6 + $0x70] sm:$0xff]
    %v60 = vld [vmem:[#allocation6 + $0x78] sm:$0xff]
    %v61 = vld [vmem:[#allocation6 + $0x80] sm:$0xff]
    %v62 = vld [vmem:[#allocation6 + $0x88] sm:$0xff]
    %v63 = vld [vmem:[#allocation6 + $0x90] sm:$0xff]
    %v64 = vld [vmem:[#allocation6 + $0x98] sm:$0xff]
    %v65 = vld [vmem:[#allocation6 + $0xa0] sm:$0xff]
    %v66 = vld [vmem:[#allocation6 + $0xa8] sm:$0xff]
    %v67 = vld [vmem:[#allocation6 + $0xb0] sm:$0xff]
    %v68 = vld [vmem:[#allocation6 + $0xb8] sm:$0xff]
    %v69 = vld [vmem:[#allocation6 + $0xc0] sm:$0xff]
    %v70 = vld [vmem:[#allocation6 + $0xc8] sm:$0xff]
    %v71 = vld [vmem:[#allocation6 + $0xd0] sm:$0xff]
    %v72 = vld [vmem:[#allocation6 + $0xd8] sm:$0xff]
    %v73 = vld [vmem:[#allocation6 + $0xe0] sm:$0xff]
    %v74 = vld [vmem:[#allocation6 + $0xe8] sm:$0xff]
    %v75 = vld [vmem:[#allocation6 + $0xf0] sm:$0xff]
    %v76 = vld [vmem:[#allocation6 + $0xf8] sm:$0xff]
    %v77 = vld [vmem:[#allocation6 + $0x100] sm:$0xff]
    %v78 = vld [vmem:[#allocation6 + $0x108] sm:$0xff]
    %v79 = vld [vmem:[#allocation6 + $0x110] sm:$0xff]
    %v80 = vld [vmem:[#allocation6 + $0x118] sm:$0xff]
    %v81 = vld [vmem:[#allocation6 + $0x120] sm:$0xff]
    %v82 = vld [vmem:[#allocation6 + $0x128] sm:$0xff]
    %v83 = vld [vmem:[#allocation6 + $0x130] sm:$0xff]
    %v84 = vld [vmem:[#allocation6 + $0x138] sm:$0xff]
    %v85 = vld [vmem:[#allocation6 + $0x140] sm:$0xff]
    %v86 = vld [vmem:[#allocation6 + $0x148] sm:$0xff]
    %v87 = vld [vmem:[#allocation6 + $0x150] sm:$0xff]
    %v88 = vld [vmem:[#allocation6 + $0x158] sm:$0xff]
    %v89 = vld [vmem:[#allocation6 + $0x160] sm:$0xff]
    %v90 = vld [vmem:[#allocation6 + $0x168] sm:$0xff]
    %v91 = vld [vmem:[#allocation6 + $0x170] sm:$0xff]
    %v92 = vld [vmem:[#allocation6 + $0x178] sm:$0xff]
    %v93 = vld [vmem:[#allocation6 + $0x180] sm:$0xff]
    %v94 = vld [vmem:[#allocation6 + $0x188] sm:$0xff]
    %v95 = vld [vmem:[#allocation6 + $0x190] sm:$0xff]
    %v96 = vld [vmem:[#allocation6 + $0x198] sm:$0xff]
    %v97 = vld [vmem:[#allocation6 + $0x1a0] sm:$0xff]
    %v98 = vld [vmem:[#allocation6 + $0x1a8] sm:$0xff]
    %v99 = vld [vmem:[#allocation6 + $0x1b0] sm:$0xff]
    %v100 = vld [vmem:[#allocation6 + $0x1b8] sm:$0xff]
    %v101 = vld [vmem:[#allocation6 + $0x1c0] sm:$0xff]
    %v102 = vld [vmem:[#allocation6 + $0x1c8] sm:$0xff]
    %v103 = vld [vmem:[#allocation6 + $0x1d0] sm:$0xff]
    %v104 = vld [vmem:[#allocation6 + $0x1d8] sm:$0xff]
    %v105 = vld [vmem:[#allocation6 + $0x1e0] sm:$0xff]
    %v106 = vld [vmem:[#allocation6 + $0x1e8] sm:$0xff]
    %v107 = vld [vmem:[#allocation6 + $0x1f0] sm:$0xff]
    %v108 = vld [vmem:[#allocation6 + $0x1f8] sm:$0xff]
    %v109 = vld [vmem:[#allocation6 + $0x200] sm:$0xff]
    %v110 = vld [vmem:[#allocation6 + $0x208] sm:$0xff]
    %v111 = vld [vmem:[#allocation6 + $0x210] sm:$0xff]
    %v112 = vld [vmem:[#allocation6 + $0x218] sm:$0xff]
    %v113 = vld [vmem:[#allocation6 + $0x220] sm:$0xff]
    %v114 = vld [vmem:[#allocation6 + $0x228] sm:$0xff]
    %v115 = vld [vmem:[#allocation6 + $0x230] sm:$0xff]
    %v116 = vld [vmem:[#allocation6 + $0x238] sm:$0xff]
    %v117 = vld [vmem:[#allocation6 + $0x240] sm:$0xff]
    %v118 = vld [vmem:[#allocation6 + $0x248] sm:$0xff]
    %v119 = vld [vmem:[#allocation6 + $0x250] sm:$0xff]
    %v120 = vld [vmem:[#allocation6 + $0x258] sm:$0xff]
    %v121 = vld [vmem:[#allocation6 + $0x260] sm:$0xff]
    %v122 = vld [vmem:[#allocation6 + $0x268] sm:$0xff]
    %v123 = vld [vmem:[#allocation6 + $0x270] sm:$0xff]
    %v124 = vld [vmem:[#allocation6 + $0x278] sm:$0xff]
    %v125 = vld [vmem:[#allocation6 + $0x280] sm:$0xff]
    %v126 = vld [vmem:[#allocation6 + $0x288] sm:$0xff]
    %v127 = vld [vmem:[#allocation6 + $0x290] sm:$0xff]
    %v128 = vld [vmem:[#allocation6 + $0x298] sm:$0xff]
    %v129 = vld [vmem:[#allocation6 + $0x2a0] sm:$0xff]
    %v130 = vld [vmem:[#allocation6 + $0x2a8] sm:$0xff]
    %v131 = vld [vmem:[#allocation6 + $0x2b0] sm:$0xff]
    %v132 = vld [vmem:[#allocation6 + $0x2b8] sm:$0xff]
    %v133 = vld [vmem:[#allocation6 + $0x2c0] sm:$0xff]
    %v134 = vld [vmem:[#allocation6 + $0x2c8] sm:$0xff]
    %v135 = vld [vmem:[#allocation6 + $0x2d0] sm:$0xff]
    %v136 = vld [vmem:[#allocation6 + $0x2d8] sm:$0xff]
    %v137 = vld [vmem:[#allocation6 + $0x2e0] sm:$0xff]
    %v138 = vld [vmem:[#allocation6 + $0x2e8] sm:$0xff]
    %v139 = vld [vmem:[#allocation6 + $0x2f0] sm:$0xff]
    %v140 = vld [vmem:[#allocation6 + $0x2f8] sm:$0xff]
    %v141 = vld [vmem:[#allocation6 + $0x300] sm:$0xff]
    %v142 = vld [vmem:[#allocation6 + $0x308] sm:$0xff]
    %v143 = vld [vmem:[#allocation6 + $0x310] sm:$0xff]
    %v144 = vld [vmem:[#allocation6 + $0x318] sm:$0xff]
    %v145 = vld [vmem:[#allocation6 + $0x320] sm:$0xff]
    %v146 = vld [vmem:[#allocation6 + $0x328] sm:$0xff]
    %v147 = vld [vmem:[#allocation6 + $0x330] sm:$0xff]
    %v148 = vld [vmem:[#allocation6 + $0x338] sm:$0xff]
    %v149 = vld [vmem:[#allocation6 + $0x340] sm:$0xff]
    %v150 = vld [vmem:[#allocation6 + $0x348] sm:$0xff]
    %v151 = vld [vmem:[#allocation6 + $0x350] sm:$0xff]
    %v152 = vld [vmem:[#allocation6 + $0x358] sm:$0xff]
    %v153 = vld [vmem:[#allocation6 + $0x360] sm:$0xff]
    %v154 = vld [vmem:[#allocation6 + $0x368] sm:$0xff]
    %v155 = vld [vmem:[#allocation6 + $0x370] sm:$0xff]
    %v156 = vld [vmem:[#allocation6 + $0x378] sm:$0xff]
    %v157 = vld [vmem:[#allocation6 + $0x380] sm:$0xff]
    %v158 = vld [vmem:[#allocation6 + $0x388] sm:$0xff]
    %v159 = vld [vmem:[#allocation6 + $0x390] sm:$0xff]
    %v160 = vld [vmem:[#allocation6 + $0x398] sm:$0xff]
    %v161 = vld [vmem:[#allocation6 + $0x3a0] sm:$0xff]
    %v162 = vld [vmem:[#allocation6 + $0x3a8] sm:$0xff]
    %v163 = vld [vmem:[#allocation6 + $0x3b0] sm:$0xff]
    %v164 = vld [vmem:[#allocation6 + $0x3b8] sm:$0xff]
    %v165 = vld [vmem:[#allocation6 + $0x3c0] sm:$0xff]
    %v166 = vld [vmem:[#allocation6 + $0x3c8] sm:$0xff]
    %v167 = vld [vmem:[#allocation6 + $0x3d0] sm:$0xff]
    %v168 = vld [vmem:[#allocation6 + $0x3d8] sm:$0xff]
    %v169 = vld [vmem:[#allocation6 + $0x3e0] sm:$0xff]
    %v170 = vld [vmem:[#allocation6 + $0x3e8] sm:$0xff]
    %v171 = vld [vmem:[#allocation6 + $0x3f0] sm:$0xff]
    %v172 = vld [vmem:[#allocation6 + $0x3f8] sm:$0xff]
    %v173 = vld [vmem:[#allocation6 + $0x400] sm:$0xff]
    %v174 = vld [vmem:[#allocation6 + $0x408] sm:$0xff]
    %v175 = vld [vmem:[#allocation6 + $0x410] sm:$0xff]
    %v176 = vld [vmem:[#allocation6 + $0x418] sm:$0xff]
    %v177 = vld [vmem:[#allocation6 + $0x420] sm:$0xff]
    %v178 = vld [vmem:[#allocation6 + $0x428] sm:$0xff]
    %v179 = vld [vmem:[#allocation6 + $0x430] sm:$0xff]
    %v180 = vld [vmem:[#allocation6 + $0x438] sm:$0xff]
    %v181 = vld [vmem:[#allocation6 + $0x440] sm:$0xff]
    %v182 = vld [vmem:[#allocation6 + $0x448] sm:$0xff]
    %v183 = vld [vmem:[#allocation6 + $0x450] sm:$0xff]
    %v184 = vld [vmem:[#allocation6 + $0x458] sm:$0xff]
    %v185 = vld [vmem:[#allocation6 + $0x460] sm:$0xff]
    %v186 = vld [vmem:[#allocation6 + $0x468] sm:$0xff]
    %v187 = vld [vmem:[#allocation6 + $0x470] sm:$0xff]
    %v188 = vld [vmem:[#allocation6 + $0x478] sm:$0xff]
    %v189 = vld [vmem:[#allocation6 + $0x480] sm:$0xff]
    %v190 = vld [vmem:[#allocation6 + $0x488] sm:$0xff]
    %v191 = vld [vmem:[#allocation6 + $0x490] sm:$0xff]
    %v192 = vld [vmem:[#allocation6 + $0x498] sm:$0xff]
    %v193 = vld [vmem:[#allocation6 + $0x4a0] sm:$0xff]
    %v194 = vld [vmem:[#allocation6 + $0x4a8] sm:$0xff]
    %v195 = vld [vmem:[#allocation6 + $0x4b0] sm:$0xff]
    %v196 = vld [vmem:[#allocation6 + $0x4b8] sm:$0xff]
    %v197 = vld [vmem:[#allocation6 + $0x4c0] sm:$0xff]
    %v198 = vld [vmem:[#allocation6 + $0x4c8] sm:$0xff]
    %v199 = vld [vmem:[#allocation6 + $0x4d0] sm:$0xff]
    %v200 = vld [vmem:[#allocation6 + $0x4d8] sm:$0xff]
    %v201 = vld [vmem:[#allocation6 + $0x4e0] sm:$0xff]
    %v202 = vld [vmem:[#allocation6 + $0x4e8] sm:$0xff]
    %v203 = vld [vmem:[#allocation6 + $0x4f0] sm:$0xff]
    %v204 = vld [vmem:[#allocation6 + $0x4f8] sm:$0xff]
    %v205 = vld [vmem:[#allocation6 + $0x500] sm:$0xff]
    %v206 = vld [vmem:[#allocation6 + $0x508] sm:$0xff]
    %v207 = vld [vmem:[#allocation6 + $0x510] sm:$0xff]
    %v208 = vld [vmem:[#allocation6 + $0x518] sm:$0xff]
    %v209 = vld [vmem:[#allocation6 + $0x520] sm:$0xff]
    %v210 = vld [vmem:[#allocation6 + $0x528] sm:$0xff]
    %v211 = vld [vmem:[#allocation6 + $0x530] sm:$0xff]
    %v212 = vld [vmem:[#allocation6 + $0x538] sm:$0xff]
    %v213 = vld [vmem:[#allocation6 + $0x540] sm:$0xff]
    %v214 = vld [vmem:[#allocation6 + $0x548] sm:$0xff]
    %v215 = vld [vmem:[#allocation6 + $0x550] sm:$0xff]
    %v216 = vld [vmem:[#allocation6 + $0x558] sm:$0xff]
    %v217 = vld [vmem:[#allocation6 + $0x560] sm:$0xff]
    %v218 = vld [vmem:[#allocation6 + $0x568] sm:$0xff]
    %v219 = vld [vmem:[#allocation6 + $0x570] sm:$0xff]
    %v220 = vld [vmem:[#allocation6 + $0x578] sm:$0xff]
    %v221 = vld [vmem:[#allocation6 + $0x580] sm:$0xff]
    %v222 = vld [vmem:[#allocation6 + $0x588] sm:$0xff]
    %v223 = vld [vmem:[#allocation6 + $0x590] sm:$0xff]
    %v224 = vld [vmem:[#allocation6 + $0x598] sm:$0xff]
    %v225 = vld [vmem:[#allocation6 + $0x5a0] sm:$0xff]
    %v226 = vld [vmem:[#allocation6 + $0x5a8] sm:$0xff]
    %v227 = vld [vmem:[#allocation6 + $0x5b0] sm:$0xff]
    %v228 = vld [vmem:[#allocation6 + $0x5b8] sm:$0xff]
    %v229 = vld [vmem:[#allocation6 + $0x5c0] sm:$0xff]
    %v230 = vld [vmem:[#allocation6 + $0x5c8] sm:$0xff]
    %v231 = vld [vmem:[#allocation6 + $0x5d0] sm:$0xff]
    %v232 = vld [vmem:[#allocation6 + $0x5d8] sm:$0xff]
    %v233 = vld [vmem:[#allocation6 + $0x5e0] sm:$0xff]
    %v234 = vld [vmem:[#allocation6 + $0x5e8] sm:$0xff]
    %v235 = vld [vmem:[#allocation6 + $0x5f0] sm:$0xff]
    %v236 = vld [vmem:[#allocation6 + $0x5f8] sm:$0xff]
    %v237 = vld [vmem:[#allocation6 + $0x600] sm:$0xff]
    %v238 = vld [vmem:[#allocation6 + $0x608] sm:$0xff]
    %v239 = vld [vmem:[#allocation6 + $0x610] sm:$0xff]
    %v240 = vld [vmem:[#allocation6 + $0x618] sm:$0xff]
    %v241 = vld [vmem:[#allocation6 + $0x620] sm:$0xff]
    %v242 = vld [vmem:[#allocation6 + $0x628] sm:$0xff]
    %v243 = vld [vmem:[#allocation6 + $0x630] sm:$0xff]
    %v244 = vld [vmem:[#allocation6 + $0x638] sm:$0xff]
    %v245 = vld [vmem:[#allocation6 + $0x640] sm:$0xff]
    %v246 = vld [vmem:[#allocation6 + $0x648] sm:$0xff]
    %v247 = vld [vmem:[#allocation6 + $0x650] sm:$0xff]
    %v248 = vld [vmem:[#allocation6 + $0x658] sm:$0xff]
    %v249 = vld [vmem:[#allocation6 + $0x660] sm:$0xff]
    %v250 = vld [vmem:[#allocation6 + $0x668] sm:$0xff]
    %v251 = vld [vmem:[#allocation6 + $0x670] sm:$0xff]
    %v252 = vld [vmem:[#allocation6 + $0x678] sm:$0xff]
    %v253 = vld [vmem:[#allocation6 + $0x680] sm:$0xff]
    %v254 = vld [vmem:[#allocation6 + $0x688] sm:$0xff]
    %v255 = vld [vmem:[#allocation6 + $0x690] sm:$0xff]
    %v256 = vld [vmem:[#allocation6 + $0x698] sm:$0xff]
    %v257 = vld [vmem:[#allocation6 + $0x6a0] sm:$0xff]
    %v258 = vld [vmem:[#allocation6 + $0x6a8] sm:$0xff]
    %v259 = vld [vmem:[#allocation6 + $0x6b0] sm:$0xff]
    %v260 = vld [vmem:[#allocation6 + $0x6b8] sm:$0xff]
    %v261 = vld [vmem:[#allocation6 + $0x6c0] sm:$0xff]
    %v262 = vld [vmem:[#allocation6 + $0x6c8] sm:$0xff]
    %v263 = vld [vmem:[#allocation6 + $0x6d0] sm:$0xff]
    %v264 = vld [vmem:[#allocation6 + $0x6d8] sm:$0xff]
    %v265 = vld [vmem:[#allocation6 + $0x6e0] sm:$0xff]
    %v266 = vld [vmem:[#allocation6 + $0x6e8] sm:$0xff]
    %v267 = vld [vmem:[#allocation6 + $0x6f0] sm:$0xff]
    %v268 = vld [vmem:[#allocation6 + $0x6f8] sm:$0xff]
    %v269 = vld [vmem:[#allocation6 + $0x700] sm:$0xff]
    %v270 = vld [vmem:[#allocation6 + $0x708] sm:$0xff]
    %v271 = vld [vmem:[#allocation6 + $0x710] sm:$0xff]
    %v272 = vld [vmem:[#allocation6 + $0x718] sm:$0xff]
    %v273 = vld [vmem:[#allocation6 + $0x720] sm:$0xff]
    %v274 = vld [vmem:[#allocation6 + $0x728] sm:$0xff]
    %v275 = vld [vmem:[#allocation6 + $0x730] sm:$0xff]
    %v276 = vld [vmem:[#allocation6 + $0x738] sm:$0xff]
    %v277 = vld [vmem:[#allocation6 + $0x740] sm:$0xff]
    %v278 = vld [vmem:[#allocation6 + $0x748] sm:$0xff]
    %v279 = vld [vmem:[#allocation6 + $0x750] sm:$0xff]
    %v280 = vld [vmem:[#allocation6 + $0x758] sm:$0xff]
    %v281 = vld [vmem:[#allocation6 + $0x760] sm:$0xff]
    %v282 = vld [vmem:[#allocation6 + $0x768] sm:$0xff]
    %v283 = vld [vmem:[#allocation6 + $0x770] sm:$0xff]
    %v284 = vld [vmem:[#allocation6 + $0x778] sm:$0xff]
    %v285 = vld [vmem:[#allocation6 + $0x780] sm:$0xff]
    %v286 = vld [vmem:[#allocation6 + $0x788] sm:$0xff]
    %v287 = vld [vmem:[#allocation6 + $0x790] sm:$0xff]
    %v288 = vld [vmem:[#allocation6 + $0x798] sm:$0xff]
    %v289 = vld [vmem:[#allocation6 + $0x7a0] sm:$0xff]
    %v290 = vld [vmem:[#allocation6 + $0x7a8] sm:$0xff]
    %v291 = vld [vmem:[#allocation6 + $0x7b0] sm:$0xff]
    %v292 = vld [vmem:[#allocation6 + $0x7b8] sm:$0xff]
    %v293 = vld [vmem:[#allocation6 + $0x7c0] sm:$0xff]
    %v294 = vld [vmem:[#allocation6 + $0x7c8] sm:$0xff]
    %v295 = vld [vmem:[#allocation6 + $0x7d0] sm:$0xff]
    %v296 = vld [vmem:[#allocation6 + $0x7d8] sm:$0xff]
    %v297 = vld [vmem:[#allocation6 + $0x7e0] sm:$0xff]
    %v298 = vld [vmem:[#allocation6 + $0x7e8] sm:$0xff]
    %v299 = vld [vmem:[#allocation6 + $0x7f0] sm:$0xff]
    %v300 = vld [vmem:[#allocation6 + $0x7f8] sm:$0xff]
    %v301 = vld [vmem:[#allocation6 + $0x800] sm:$0xff]
    %v302 = vld [vmem:[#allocation6 + $0x808] sm:$0xff]
    %v303 = vld [vmem:[#allocation6 + $0x810] sm:$0xff]
    %v304 = vld [vmem:[#allocation6 + $0x818] sm:$0xff]
    %v305 = vld [vmem:[#allocation6 + $0x820] sm:$0xff]
    %v306 = vld [vmem:[#allocation6 + $0x828] sm:$0xff]
    %v307 = vld [vmem:[#allocation6 + $0x830] sm:$0xff]
    %v308 = vld [vmem:[#allocation6 + $0x838] sm:$0xff]
    %v309 = vld [vmem:[#allocation6 + $0x840] sm:$0xff]
    %v310 = vld [vmem:[#allocation6 + $0x848] sm:$0xff]
    %v311 = vld [vmem:[#allocation6 + $0x850] sm:$0xff]
    %v312 = vld [vmem:[#allocation6 + $0x858] sm:$0xff]
    %v313 = vld [vmem:[#allocation6 + $0x860] sm:$0xff]
    %v314 = vld [vmem:[#allocation6 + $0x868] sm:$0xff]
    %v315 = vld [vmem:[#allocation6 + $0x870] sm:$0xff]
    %v316 = vld [vmem:[#allocation6 + $0x878] sm:$0xff]
    %v317 = vld [vmem:[#allocation6 + $0x880] sm:$0xff]
    %v318 = vld [vmem:[#allocation6 + $0x888] sm:$0xff]
    %v319 = vld [vmem:[#allocation6 + $0x890] sm:$0xff]
    %v320 = vld [vmem:[#allocation6 + $0x898] sm:$0xff]
    %v321 = vld [vmem:[#allocation6 + $0x8a0] sm:$0xff]
    %v322 = vld [vmem:[#allocation6 + $0x8a8] sm:$0xff]
    %v323 = vld [vmem:[#allocation6 + $0x8b0] sm:$0xff]
    %v324 = vld [vmem:[#allocation6 + $0x8b8] sm:$0xff]
    %v325 = vld [vmem:[#allocation6 + $0x8c0] sm:$0xff]
    %v326 = vld [vmem:[#allocation6 + $0x8c8] sm:$0xff]
    %v327 = vld [vmem:[#allocation6 + $0x8d0] sm:$0xff]
    %v328 = vld [vmem:[#allocation6 + $0x8d8] sm:$0xff]
    %v329 = vld [vmem:[#allocation6 + $0x8e0] sm:$0xff]
    %v330 = vld [vmem:[#allocation6 + $0x8e8] sm:$0xff]
    %v331 = vld [vmem:[#allocation6 + $0x8f0] sm:$0xff]
    %v332 = vld [vmem:[#allocation6 + $0x8f8] sm:$0xff]
    %v333 = vld [vmem:[#allocation6 + $0x900] sm:$0xff]
    %v334 = vld [vmem:[#allocation6 + $0x908] sm:$0xff]
    %v335 = vld [vmem:[#allocation6 + $0x910] sm:$0xff]
    %v336 = vld [vmem:[#allocation6 + $0x918] sm:$0xff]
    %v337 = vld [vmem:[#allocation6 + $0x920] sm:$0xff]
    %v338 = vld [vmem:[#allocation6 + $0x928] sm:$0xff]
    %v339 = vld [vmem:[#allocation6 + $0x930] sm:$0xff]
    %v340 = vld [vmem:[#allocation6 + $0x938] sm:$0xff]
    %v341 = vld [vmem:[#allocation6 + $0x940] sm:$0xff]
    %v342 = vld [vmem:[#allocation6 + $0x948] sm:$0xff]
    %v343 = vld [vmem:[#allocation6 + $0x950] sm:$0xff]
    %v344 = vld [vmem:[#allocation6 + $0x958] sm:$0xff]
    %v345 = vld [vmem:[#allocation6 + $0x960] sm:$0xff]
    %v346 = vld [vmem:[#allocation6 + $0x968] sm:$0xff]
    %v347 = vld [vmem:[#allocation6 + $0x970] sm:$0xff]
    %v348 = vld [vmem:[#allocation6 + $0x978] sm:$0xff]
    %v349 = vld [vmem:[#allocation6 + $0x980] sm:$0xff]
    %v350 = vld [vmem:[#allocation6 + $0x988] sm:$0xff]
    %v351 = vld [vmem:[#allocation6 + $0x990] sm:$0xff]
    %v352 = vld [vmem:[#allocation6 + $0x998] sm:$0xff]
    %v353 = vld [vmem:[#allocation6 + $0x9a0] sm:$0xff]
    %v354 = vld [vmem:[#allocation6 + $0x9a8] sm:$0xff]
    %v355 = vld [vmem:[#allocation6 + $0x9b0] sm:$0xff]
    %v356 = vld [vmem:[#allocation6 + $0x9b8] sm:$0xff]
    %v357 = vld [vmem:[#allocation6 + $0x9c0] sm:$0xff]
    %v358 = vld [vmem:[#allocation6 + $0x9c8] sm:$0xff]
    %v359 = vld [vmem:[#allocation6 + $0x9d0] sm:$0xff]
    %v360 = vld [vmem:[#allocation6 + $0x9d8] sm:$0xff]
    %v361 = vld [vmem:[#allocation6 + $0x9e0] sm:$0xff]
    %v362 = vld [vmem:[#allocation6 + $0x9e8] sm:$0xff]
    %v363 = vld [vmem:[#allocation6 + $0x9f0] sm:$0xff]
    %v364 = vld [vmem:[#allocation6 + $0x9f8] sm:$0xff]
    %v365 = vld [vmem:[#allocation6 + $0xa00] sm:$0xff]
    %v366 = vld [vmem:[#allocation6 + $0xa08] sm:$0xff]
    %v367 = vld [vmem:[#allocation6 + $0xa10] sm:$0xff]
    %v368 = vld [vmem:[#allocation6 + $0xa18] sm:$0xff]
    %v369 = vld [vmem:[#allocation6 + $0xa20] sm:$0xff]
    %v370 = vld [vmem:[#allocation6 + $0xa28] sm:$0xff]
    %v371 = vld [vmem:[#allocation6 + $0xa30] sm:$0xff]
    %v372 = vld [vmem:[#allocation6 + $0xa38] sm:$0xff]
    %v373 = vld [vmem:[#allocation6 + $0xa40] sm:$0xff]
    %v374 = vld [vmem:[#allocation6 + $0xa48] sm:$0xff]
    %v375 = vld [vmem:[#allocation6 + $0xa50] sm:$0xff]
    %v376 = vld [vmem:[#allocation6 + $0xa58] sm:$0xff]
    %v377 = vld [vmem:[#allocation6 + $0xa60] sm:$0xff]
    %v378 = vld [vmem:[#allocation6 + $0xa68] sm:$0xff]
    %v379 = vld [vmem:[#allocation6 + $0xa70] sm:$0xff]
    %v380 = vld [vmem:[#allocation6 + $0xa78] sm:$0xff]
    %v381 = vld [vmem:[#allocation6 + $0xa80] sm:$0xff]
    %v382 = vld [vmem:[#allocation6 + $0xa88] sm:$0xff]
    %v383 = vld [vmem:[#allocation6 + $0xa90] sm:$0xff]
    %v384 = vld [vmem:[#allocation6 + $0xa98] sm:$0xff]
    %v385 = vld [vmem:[#allocation6 + $0xaa0] sm:$0xff]
    %v386 = vld [vmem:[#allocation6 + $0xaa8] sm:$0xff]
    %v387 = vld [vmem:[#allocation6 + $0xab0] sm:$0xff]
    %v388 = vld [vmem:[#allocation6 + $0xab8] sm:$0xff]
    %v389 = vld [vmem:[#allocation6 + $0xac0] sm:$0xff]
    %v390 = vld [vmem:[#allocation6 + $0xac8] sm:$0xff]
    %v391 = vld [vmem:[#allocation6 + $0xad0] sm:$0xff]
    %v392 = vld [vmem:[#allocation6 + $0xad8] sm:$0xff]
    %v393 = vld [vmem:[#allocation6 + $0xae0] sm:$0xff]
    %v394 = vld [vmem:[#allocation6 + $0xae8] sm:$0xff]
    %v395 = vld [vmem:[#allocation6 + $0xaf0] sm:$0xff]
    %v396 = vld [vmem:[#allocation6 + $0xaf8] sm:$0xff]
    %v397 = vld [vmem:[#allocation6 + $0xb00] sm:$0xff]
    %v398 = vld [vmem:[#allocation6 + $0xb08] sm:$0xff]
    %v399 = vld [vmem:[#allocation6 + $0xb10] sm:$0xff]
    %v400 = vld [vmem:[#allocation6 + $0xb18] sm:$0xff]
    %v401 = vld [vmem:[#allocation6 + $0xb20] sm:$0xff]
    %v402 = vld [vmem:[#allocation6 + $0xb28] sm:$0xff]
    %v403 = vld [vmem:[#allocation6 + $0xb30] sm:$0xff]
    %v404 = vld [vmem:[#allocation6 + $0xb38] sm:$0xff]
    %v405 = vld [vmem:[#allocation6 + $0xb40] sm:$0xff]
    %v406 = vld [vmem:[#allocation6 + $0xb48] sm:$0xff]
    %v407 = vld [vmem:[#allocation6 + $0xb50] sm:$0xff]
    %v408 = vld [vmem:[#allocation6 + $0xb58] sm:$0xff]
    %v409 = vld [vmem:[#allocation6 + $0xb60] sm:$0xff]
    %v410 = vld [vmem:[#allocation6 + $0xb68] sm:$0xff]
    %v411 = vld [vmem:[#allocation6 + $0xb70] sm:$0xff]
    %v412 = vld [vmem:[#allocation6 + $0xb78] sm:$0xff]
    %v413 = vld [vmem:[#allocation6 + $0xb80] sm:$0xff]
    %v414 = vld [vmem:[#allocation6 + $0xb88] sm:$0xff]
    %v415 = vld [vmem:[#allocation6 + $0xb90] sm:$0xff]
    %v416 = vld [vmem:[#allocation6 + $0xb98] sm:$0xff]
    %v417 = vld [vmem:[#allocation6 + $0xba0] sm:$0xff]
    %v418 = vld [vmem:[#allocation6 + $0xba8] sm:$0xff]
    %v419 = vld [vmem:[#allocation6 + $0xbb0] sm:$0xff]
    %v420 = vld [vmem:[#allocation6 + $0xbb8] sm:$0xff]
    %v421 = vld [vmem:[#allocation6 + $0xbc0] sm:$0xff]
    %v422 = vld [vmem:[#allocation6 + $0xbc8] sm:$0xff]
    %v423 = vld [vmem:[#allocation6 + $0xbd0] sm:$0xff]
    %v424 = vld [vmem:[#allocation6 + $0xbd8] sm:$0xff]
    %v425 = vld [vmem:[#allocation6 + $0xbe0] sm:$0xff]
    %v426 = vld [vmem:[#allocation6 + $0xbe8] sm:$0xff]
    %v427 = vld [vmem:[#allocation6 + $0xbf0] sm:$0xff]
    %v428 = vld [vmem:[#allocation6 + $0xbf8] sm:$0xff]
    %s429 = sld [smem:[#allocation2]]
    %v430 = vstv %s429
    %v434 = vlaneseq
    %v435 = vshrl.u32 %v434, 7
    %v436 = vsub.s32 0, %v435
    %v437 = vrot.slane %v42, %v436
    %v438 = vlaneseq
    %v439 = vshrl.u32 %v438, 7
    %v440 = vsub.s32 1, %v439
    %v441 = vrot.slane %v42, %v440
    %v442 = vlaneseq
    %v443 = vshrl.u32 %v442, 7
    %v444 = vsub.s32 2, %v443
    %v445 = vrot.slane %v42, %v444
    %v446 = vlaneseq
    %v447 = vshrl.u32 %v446, 7
    %v448 = vsub.s32 3, %v447
    %v449 = vrot.slane %v42, %v448
    %v450 = vlaneseq
    %v451 = vshrl.u32 %v450, 7
    %v452 = vsub.s32 4, %v451
    %v453 = vrot.slane %v42, %v452
    %v454 = vlaneseq
    %v455 = vshrl.u32 %v454, 7
    %v456 = vsub.s32 5, %v455
    %v457 = vrot.slane %v42, %v456
    %v458 = vlaneseq
    %v459 = vshrl.u32 %v458, 7
    %v460 = vsub.s32 6, %v459
    %v461 = vrot.slane %v42, %v460
    %v462 = vlaneseq
    %v463 = vshrl.u32 %v462, 7
    %v464 = vsub.s32 7, %v463
    %v465 = vrot.slane %v42, %v464
    %v466 = vlaneseq
    %v467 = vshrl.u32 %v466, 7
    %v468 = vsub.s32 0, %v467
    %v469 = vrot.slane %v43, %v468
    %v470 = vlaneseq
    %v471 = vshrl.u32 %v470, 7
    %v472 = vsub.s32 1, %v471
    %v473 = vrot.slane %v43, %v472
    %v474 = vlaneseq
    %v475 = vshrl.u32 %v474, 7
    %v476 = vsub.s32 2, %v475
    %v477 = vrot.slane %v43, %v476
    %v478 = vlaneseq
    %v479 = vshrl.u32 %v478, 7
    %v480 = vsub.s32 3, %v479
    %v481 = vrot.slane %v43, %v480
    %v482 = vlaneseq
    %v483 = vshrl.u32 %v482, 7
    %v484 = vsub.s32 4, %v483
    %v485 = vrot.slane %v43, %v484
    %v486 = vlaneseq
    %v487 = vshrl.u32 %v486, 7
    %v488 = vsub.s32 5, %v487
    %v489 = vrot.slane %v43, %v488
    %v490 = vlaneseq
    %v491 = vshrl.u32 %v490, 7
    %v492 = vsub.s32 6, %v491
    %v493 = vrot.slane %v43, %v492
    %v494 = vlaneseq
    %v495 = vshrl.u32 %v494, 7
    %v496 = vsub.s32 7, %v495
    %v497 = vrot.slane %v43, %v496
    %v498 = vlaneseq
    %v499 = vshrl.u32 %v498, 7
    %v500 = vsub.s32 0, %v499
    %v501 = vrot.slane %v44, %v500
    %v502 = vlaneseq
    %v503 = vshrl.u32 %v502, 7
    %v504 = vsub.s32 1, %v503
    %v505 = vrot.slane %v44, %v504
    %v506 = vlaneseq
    %v507 = vshrl.u32 %v506, 7
    %v508 = vsub.s32 2, %v507
    %v509 = vrot.slane %v44, %v508
    %v510 = vlaneseq
    %v511 = vshrl.u32 %v510, 7
    %v512 = vsub.s32 3, %v511
    %v513 = vrot.slane %v44, %v512
    %v514 = vlaneseq
    %v515 = vshrl.u32 %v514, 7
    %v516 = vsub.s32 4, %v515
    %v517 = vrot.slane %v44, %v516
    %v518 = vlaneseq
    %v519 = vshrl.u32 %v518, 7
    %v520 = vsub.s32 5, %v519
    %v521 = vrot.slane %v44, %v520
    %v522 = vlaneseq
    %v523 = vshrl.u32 %v522, 7
    %v524 = vsub.s32 6, %v523
    %v525 = vrot.slane %v44, %v524
    %v526 = vlaneseq
    %v527 = vshrl.u32 %v526, 7
    %v528 = vsub.s32 7, %v527
    %v529 = vrot.slane %v44, %v528
    %554 = vmatprep.subr.mxu0 0.0
    %555 = vmatpush1.msra.mxu0 %v45
    %556 = vmatprep.subr.mxu0 0.0
    %557 = vmatpush1.msra.mxu0 %v46
    %558 = vmatprep.subr.mxu0 0.0
    %559 = vmatpush1.msra.mxu0 %v47
    %560 = vmatprep.subr.mxu0 0.0
    %561 = vmatpush1.msra.mxu0 %v48
    %562 = vmatprep.subr.mxu0 0.0
    %563 = vmatpush1.msra.mxu0 %v49
    %564 = vmatprep.subr.mxu0 0.0
    %565 = vmatpush1.msra.mxu0 %v50
    %566 = vmatprep.subr.mxu0 0.0
    %567 = vmatpush1.msra.mxu0 %v51
    %568 = vmatprep.subr.mxu0 0.0
    %569 = vmatpush1.msra.mxu0 %v52
    %570 = vmatprep.subr.mxu0 0.0
    %571 = vmatpush1.msra.mxu0 %v53
    %572 = vmatprep.subr.mxu0 0.0
    %573 = vmatpush1.msra.mxu0 %v54
    %574 = vmatprep.subr.mxu0 0.0
    %575 = vmatpush1.msra.mxu0 %v55
    %576 = vmatprep.subr.mxu0 0.0
    %577 = vmatpush1.msra.mxu0 %v56
    %578 = vmatprep.subr.mxu0 0.0
    %579 = vmatpush1.msra.mxu0 %v57
    %580 = vmatprep.subr.mxu0 0.0
    %581 = vmatpush1.msra.mxu0 %v58
    %582 = vmatprep.subr.mxu0 0.0
    %583 = vmatpush1.msra.mxu0 %v59
    %584 = vmatprep.subr.mxu0 0.0
    %585 = vmatpush1.msra.mxu0 %v60
    %586 = vmatprep.subr.mxu0 0.0
    %587 = vmatpush1.msra.mxu0 %v61
    %588 = vmatprep.subr.mxu0 0.0
    %589 = vmatpush1.msra.mxu0 %v62
    %590 = vmatprep.subr.mxu0 0.0
    %591 = vmatpush1.msra.mxu0 %v63
    %592 = vmatprep.subr.mxu0 0.0
    %593 = vmatpush1.msra.mxu0 %v64
    %594 = vmatprep.subr.mxu0 0.0
    %595 = vmatpush1.msra.mxu0 %v65
    %596 = vmatprep.subr.mxu0 0.0
    %597 = vmatpush1.msra.mxu0 %v66
    %598 = vmatprep.subr.mxu0 0.0
    %599 = vmatpush1.msra.mxu0 %v67
    %600 = vmatprep.subr.mxu0 0.0
    %601 = vmatpush1.msra.mxu0 %v68
    %602 = vmatprep.subr.mxu0 0.0
    %603 = vmatpush1.msra.mxu0 %v69
    %604 = vmatprep.subr.mxu0 0.0
    %605 = vmatpush1.msra.mxu0 %v70
    %606 = vmatprep.subr.mxu0 0.0
    %607 = vmatpush1.msra.mxu0 %v71
    %608 = vmatprep.subr.mxu0 0.0
    %609 = vmatpush1.msra.mxu0 %v72
    %610 = vmatprep.subr.mxu0 0.0
    %611 = vmatpush1.msra.mxu0 %v73
    %612 = vmatprep.subr.mxu0 0.0
    %613 = vmatpush1.msra.mxu0 %v74
    %614 = vmatprep.subr.mxu0 0.0
    %615 = vmatpush1.msra.mxu0 %v75
    %616 = vmatprep.subr.mxu0 0.0
    %617 = vmatpush1.msra.mxu0 %v76
    %618 = vmatprep.mubr.f32.mxu0 %v441
    %619 = vmatmul.mubr.f32.gmra.mrb[0].mxu0 %v437
    %v620 = vpop.f32.mrb[0].mxu0
    %v621 = vadd.f32 %v430, %v620
    %v622 = vpop.f32.mrb[0].mxu0
    %623 = vdwg.mxu0
    %624 = vmatprep.subr.mxu0 0.0
    %625 = vmatpush1.msra.mxu0 %v77
    %626 = vmatprep.subr.mxu0 0.0
    %627 = vmatpush1.msra.mxu0 %v78
    %628 = vmatprep.subr.mxu0 0.0
    %629 = vmatpush1.msra.mxu0 %v79
    %630 = vmatprep.subr.mxu0 0.0
    %631 = vmatpush1.msra.mxu0 %v80
    %632 = vmatprep.subr.mxu0 0.0
    %633 = vmatpush1.msra.mxu0 %v81
    %634 = vmatprep.subr.mxu0 0.0
    %635 = vmatpush1.msra.mxu0 %v82
    %636 = vmatprep.subr.mxu0 0.0
    %637 = vmatpush1.msra.mxu0 %v83
    %638 = vmatprep.subr.mxu0 0.0
    %639 = vmatpush1.msra.mxu0 %v84
    %640 = vmatprep.subr.mxu0 0.0
    %641 = vmatpush1.msra.mxu0 %v85
    %642 = vmatprep.subr.mxu0 0.0
    %643 = vmatpush1.msra.mxu0 %v86
    %644 = vmatprep.subr.mxu0 0.0
    %645 = vmatpush1.msra.mxu0 %v87
    %646 = vmatprep.subr.mxu0 0.0
    %647 = vmatpush1.msra.mxu0 %v88
    %648 = vmatprep.subr.mxu0 0.0
    %649 = vmatpush1.msra.mxu0 %v89
    %650 = vmatprep.subr.mxu0 0.0
    %651 = vmatpush1.msra.mxu0 %v90
    %652 = vmatprep.subr.mxu0 0.0
    %653 = vmatpush1.msra.mxu0 %v91
    %654 = vmatprep.subr.mxu0 0.0
    %655 = vmatpush1.msra.mxu0 %v92
    %656 = vmatprep.subr.mxu0 0.0
    %657 = vmatpush1.msra.mxu0 %v93
    %658 = vmatprep.subr.mxu0 0.0
    %659 = vmatpush1.msra.mxu0 %v94
    %660 = vmatprep.subr.mxu0 0.0
    %661 = vmatpush1.msra.mxu0 %v95
    %662 = vmatprep.subr.mxu0 0.0
    %663 = vmatpush1.msra.mxu0 %v96
    %664 = vmatprep.subr.mxu0 0.0
    %665 = vmatpush1.msra.mxu0 %v97
    %666 = vmatprep.subr.mxu0 0.0
    %667 = vmatpush1.msra.mxu0 %v98
    %668 = vmatprep.subr.mxu0 0.0
    %669 = vmatpush1.msra.mxu0 %v99
    %670 = vmatprep.subr.mxu0 0.0
    %671 = vmatpush1.msra.mxu0 %v100
    %672 = vmatprep.subr.mxu0 0.0
    %673 = vmatpush1.msra.mxu0 %v101
    %674 = vmatprep.subr.mxu0 0.0
    %675 = vmatpush1.msra.mxu0 %v102
    %676 = vmatprep.subr.mxu0 0.0
    %677 = vmatpush1.msra.mxu0 %v103
    %678 = vmatprep.subr.mxu0 0.0
    %679 = vmatpush1.msra.mxu0 %v104
    %680 = vmatprep.subr.mxu0 0.0
    %681 = vmatpush1.msra.mxu0 %v105
    %682 = vmatprep.subr.mxu0 0.0
    %683 = vmatpush1.msra.mxu0 %v106
    %684 = vmatprep.subr.mxu0 0.0
    %685 = vmatpush1.msra.mxu0 %v107
    %686 = vmatprep.subr.mxu0 0.0
    %687 = vmatpush1.msra.mxu0 %v108
    %688 = vmatprep.mubr.f32.mxu0 %v449
    %689 = vmatmul.mubr.f32.gmra.mrb[0].mxu0 %v445
    %v690 = vpop.f32.mrb[0].mxu0
    %v691 = vadd.f32 %v621, %v690
    %v692 = vpop.f32.mrb[0].mxu0
    %693 = vdwg.mxu0
    %694 = vmatprep.subr.mxu0 0.0
    %695 = vmatpush1.msra.mxu0 %v109
    %696 = vmatprep.subr.mxu0 0.0
    %697 = vmatpush1.msra.mxu0 %v110
    %698 = vmatprep.subr.mxu0 0.0
    %699 = vmatpush1.msra.mxu0 %v111
    %700 = vmatprep.subr.mxu0 0.0
    %701 = vmatpush1.msra.mxu0 %v112
    %702 = vmatprep.subr.mxu0 0.0
    %703 = vmatpush1.msra.mxu0 %v113
    %704 = vmatprep.subr.mxu0 0.0
    %705 = vmatpush1.msra.mxu0 %v114
    %706 = vmatprep.subr.mxu0 0.0
    %707 = vmatpush1.msra.mxu0 %v115
    %708 = vmatprep.subr.mxu0 0.0
    %709 = vmatpush1.msra.mxu0 %v116
    %710 = vmatprep.subr.mxu0 0.0
    %711 = vmatpush1.msra.mxu0 %v117
    %712 = vmatprep.subr.mxu0 0.0
    %713 = vmatpush1.msra.mxu0 %v118
    %714 = vmatprep.subr.mxu0 0.0
    %715 = vmatpush1.msra.mxu0 %v119
    %716 = vmatprep.subr.mxu0 0.0
    %717 = vmatpush1.msra.mxu0 %v120
    %718 = vmatprep.subr.mxu0 0.0
    %719 = vmatpush1.msra.mxu0 %v121
    %720 = vmatprep.subr.mxu0 0.0
    %721 = vmatpush1.msra.mxu0 %v122
    %722 = vmatprep.subr.mxu0 0.0
    %723 = vmatpush1.msra.mxu0 %v123
    %724 = vmatprep.subr.mxu0 0.0
    %725 = vmatpush1.msra.mxu0 %v124
    %726 = vmatprep.subr.mxu0 0.0
    %727 = vmatpush1.msra.mxu0 %v125
    %728 = vmatprep.subr.mxu0 0.0
    %729 = vmatpush1.msra.mxu0 %v126
    %730 = vmatprep.subr.mxu0 0.0
    %731 = vmatpush1.msra.mxu0 %v127
    %732 = vmatprep.subr.mxu0 0.0
    %733 = vmatpush1.msra.mxu0 %v128
    %734 = vmatprep.subr.mxu0 0.0
    %735 = vmatpush1.msra.mxu0 %v129
    %736 = vmatprep.subr.mxu0 0.0
    %737 = vmatpush1.msra.mxu0 %v130
    %738 = vmatprep.subr.mxu0 0.0
    %739 = vmatpush1.msra.mxu0 %v131
    %740 = vmatprep.subr.mxu0 0.0
    %741 = vmatpush1.msra.mxu0 %v132
    %742 = vmatprep.subr.mxu0 0.0
    %743 = vmatpush1.msra.mxu0 %v133
    %744 = vmatprep.subr.mxu0 0.0
    %745 = vmatpush1.msra.mxu0 %v134
    %746 = vmatprep.subr.mxu0 0.0
    %747 = vmatpush1.msra.mxu0 %v135
    %748 = vmatprep.subr.mxu0 0.0
    %749 = vmatpush1.msra.mxu0 %v136
    %750 = vmatprep.subr.mxu0 0.0
    %751 = vmatpush1.msra.mxu0 %v137
    %752 = vmatprep.subr.mxu0 0.0
    %753 = vmatpush1.msra.mxu0 %v138
    %754 = vmatprep.subr.mxu0 0.0
    %755 = vmatpush1.msra.mxu0 %v139
    %756 = vmatprep.subr.mxu0 0.0
    %757 = vmatpush1.msra.mxu0 %v140
    %758 = vmatprep.mubr.f32.mxu0 %v457
    %759 = vmatmul.mubr.f32.gmra.mrb[0].mxu0 %v453
    %v760 = vpop.f32.mrb[0].mxu0
    %v761 = vadd.f32 %v691, %v760
    %v762 = vpop.f32.mrb[0].mxu0
    %763 = vdwg.mxu0
    %764 = vmatprep.subr.mxu0 0.0
    %765 = vmatpush1.msra.mxu0 %v141
    %766 = vmatprep.subr.mxu0 0.0
    %767 = vmatpush1.msra.mxu0 %v142
    %768 = vmatprep.subr.mxu0 0.0
    %769 = vmatpush1.msra.mxu0 %v143
    %770 = vmatprep.subr.mxu0 0.0
    %771 = vmatpush1.msra.mxu0 %v144
    %772 = vmatprep.subr.mxu0 0.0
    %773 = vmatpush1.msra.mxu0 %v145
    %774 = vmatprep.subr.mxu0 0.0
    %775 = vmatpush1.msra.mxu0 %v146
    %776 = vmatprep.subr.mxu0 0.0
    %777 = vmatpush1.msra.mxu0 %v147
    %778 = vmatprep.subr.mxu0 0.0
    %779 = vmatpush1.msra.mxu0 %v148
    %780 = vmatprep.subr.mxu0 0.0
    %781 = vmatpush1.msra.mxu0 %v149
    %782 = vmatprep.subr.mxu0 0.0
    %783 = vmatpush1.msra.mxu0 %v150
    %784 = vmatprep.subr.mxu0 0.0
    %785 = vmatpush1.msra.mxu0 %v151
    %786 = vmatprep.subr.mxu0 0.0
    %787 = vmatpush1.msra.mxu0 %v152
    %788 = vmatprep.subr.mxu0 0.0
    %789 = vmatpush1.msra.mxu0 %v153
    %790 = vmatprep.subr.mxu0 0.0
    %791 = vmatpush1.msra.mxu0 %v154
    %792 = vmatprep.subr.mxu0 0.0
    %793 = vmatpush1.msra.mxu0 %v155
    %794 = vmatprep.subr.mxu0 0.0
    %795 = vmatpush1.msra.mxu0 %v156
    %796 = vmatprep.subr.mxu0 0.0
    %797 = vmatpush1.msra.mxu0 %v157
    %798 = vmatprep.subr.mxu0 0.0
    %799 = vmatpush1.msra.mxu0 %v158
    %800 = vmatprep.subr.mxu0 0.0
    %801 = vmatpush1.msra.mxu0 %v159
    %802 = vmatprep.subr.mxu0 0.0
    %803 = vmatpush1.msra.mxu0 %v160
    %804 = vmatprep.subr.mxu0 0.0
    %805 = vmatpush1.msra.mxu0 %v161
    %806 = vmatprep.subr.mxu0 0.0
    %807 = vmatpush1.msra.mxu0 %v162
    %808 = vmatprep.subr.mxu0 0.0
    %809 = vmatpush1.msra.mxu0 %v163
    %810 = vmatprep.subr.mxu0 0.0
    %811 = vmatpush1.msra.mxu0 %v164
    %812 = vmatprep.subr.mxu0 0.0
    %813 = vmatpush1.msra.mxu0 %v165
    %814 = vmatprep.subr.mxu0 0.0
    %815 = vmatpush1.msra.mxu0 %v166
    %816 = vmatprep.subr.mxu0 0.0
    %817 = vmatpush1.msra.mxu0 %v167
    %818 = vmatprep.subr.mxu0 0.0
    %819 = vmatpush1.msra.mxu0 %v168
    %820 = vmatprep.subr.mxu0 0.0
    %821 = vmatpush1.msra.mxu0 %v169
    %822 = vmatprep.subr.mxu0 0.0
    %823 = vmatpush1.msra.mxu0 %v170
    %824 = vmatprep.subr.mxu0 0.0
    %825 = vmatpush1.msra.mxu0 %v171
    %826 = vmatprep.subr.mxu0 0.0
    %827 = vmatpush1.msra.mxu0 %v172
    %828 = vmatprep.mubr.f32.mxu0 %v465
    %829 = vmatmul.mubr.f32.gmra.mrb[0].mxu0 %v461
    %v830 = vpop.f32.mrb[0].mxu0
    %v831 = vadd.f32 %v761, %v830
    %v832 = vpop.f32.mrb[0].mxu0
    %833 = vdwg.mxu0
    %834 = vmatprep.subr.mxu0 0.0
    %835 = vmatpush1.msra.mxu0 %v173
    %836 = vmatprep.subr.mxu0 0.0
    %837 = vmatpush1.msra.mxu0 %v174
    %838 = vmatprep.subr.mxu0 0.0
    %839 = vmatpush1.msra.mxu0 %v175
    %840 = vmatprep.subr.mxu0 0.0
    %841 = vmatpush1.msra.mxu0 %v176
    %842 = vmatprep.subr.mxu0 0.0
    %843 = vmatpush1.msra.mxu0 %v177
    %844 = vmatprep.subr.mxu0 0.0
    %845 = vmatpush1.msra.mxu0 %v178
    %846 = vmatprep.subr.mxu0 0.0
    %847 = vmatpush1.msra.mxu0 %v179
    %848 = vmatprep.subr.mxu0 0.0
    %849 = vmatpush1.msra.mxu0 %v180
    %850 = vmatprep.subr.mxu0 0.0
    %851 = vmatpush1.msra.mxu0 %v181
    %852 = vmatprep.subr.mxu0 0.0
    %853 = vmatpush1.msra.mxu0 %v182
    %854 = vmatprep.subr.mxu0 0.0
    %855 = vmatpush1.msra.mxu0 %v183
    %856 = vmatprep.subr.mxu0 0.0
    %857 = vmatpush1.msra.mxu0 %v184
    %858 = vmatprep.subr.mxu0 0.0
    %859 = vmatpush1.msra.mxu0 %v185
    %860 = vmatprep.subr.mxu0 0.0
    %861 = vmatpush1.msra.mxu0 %v186
    %862 = vmatprep.subr.mxu0 0.0
    %863 = vmatpush1.msra.mxu0 %v187
    %864 = vmatprep.subr.mxu0 0.0
    %865 = vmatpush1.msra.mxu0 %v188
    %866 = vmatprep.subr.mxu0 0.0
    %867 = vmatpush1.msra.mxu0 %v189
    %868 = vmatprep.subr.mxu0 0.0
    %869 = vmatpush1.msra.mxu0 %v190
    %870 = vmatprep.subr.mxu0 0.0
    %871 = vmatpush1.msra.mxu0 %v191
    %872 = vmatprep.subr.mxu0 0.0
    %873 = vmatpush1.msra.mxu0 %v192
    %874 = vmatprep.subr.mxu0 0.0
    %875 = vmatpush1.msra.mxu0 %v193
    %876 = vmatprep.subr.mxu0 0.0
    %877 = vmatpush1.msra.mxu0 %v194
    %878 = vmatprep.subr.mxu0 0.0
    %879 = vmatpush1.msra.mxu0 %v195
    %880 = vmatprep.subr.mxu0 0.0
    %881 = vmatpush1.msra.mxu0 %v196
    %882 = vmatprep.subr.mxu0 0.0
    %883 = vmatpush1.msra.mxu0 %v197
    %884 = vmatprep.subr.mxu0 0.0
    %885 = vmatpush1.msra.mxu0 %v198
    %886 = vmatprep.subr.mxu0 0.0
    %887 = vmatpush1.msra.mxu0 %v199
    %888 = vmatprep.subr.mxu0 0.0
    %889 = vmatpush1.msra.mxu0 %v200
    %890 = vmatprep.subr.mxu0 0.0
    %891 = vmatpush1.msra.mxu0 %v201
    %892 = vmatprep.subr.mxu0 0.0
    %893 = vmatpush1.msra.mxu0 %v202
    %894 = vmatprep.subr.mxu0 0.0
    %895 = vmatpush1.msra.mxu0 %v203
    %896 = vmatprep.subr.mxu0 0.0
    %897 = vmatpush1.msra.mxu0 %v204
    %898 = vmatprep.mubr.f32.mxu0 %v473
    %899 = vmatmul.mubr.f32.gmra.mrb[0].mxu0 %v469
    %v900 = vpop.f32.mrb[0].mxu0
    %v901 = vadd.f32 %v831, %v900
    %v902 = vpop.f32.mrb[0].mxu0
    %903 = vdwg.mxu0
    %904 = vmatprep.subr.mxu0 0.0
    %905 = vmatpush1.msra.mxu0 %v205
    %906 = vmatprep.subr.mxu0 0.0
    %907 = vmatpush1.msra.mxu0 %v206
    %908 = vmatprep.subr.mxu0 0.0
    %909 = vmatpush1.msra.mxu0 %v207
    %910 = vmatprep.subr.mxu0 0.0
    %911 = vmatpush1.msra.mxu0 %v208
    %912 = vmatprep.subr.mxu0 0.0
    %913 = vmatpush1.msra.mxu0 %v209
    %914 = vmatprep.subr.mxu0 0.0
    %915 = vmatpush1.msra.mxu0 %v210
    %916 = vmatprep.subr.mxu0 0.0
    %917 = vmatpush1.msra.mxu0 %v211
    %918 = vmatprep.subr.mxu0 0.0
    %919 = vmatpush1.msra.mxu0 %v212
    %920 = vmatprep.subr.mxu0 0.0
    %921 = vmatpush1.msra.mxu0 %v213
    %922 = vmatprep.subr.mxu0 0.0
    %923 = vmatpush1.msra.mxu0 %v214
    %924 = vmatprep.subr.mxu0 0.0
    %925 = vmatpush1.msra.mxu0 %v215
    %926 = vmatprep.subr.mxu0 0.0
    %927 = vmatpush1.msra.mxu0 %v216
    %928 = vmatprep.subr.mxu0 0.0
    %929 = vmatpush1.msra.mxu0 %v217
    %930 = vmatprep.subr.mxu0 0.0
    %931 = vmatpush1.msra.mxu0 %v218
    %932 = vmatprep.subr.mxu0 0.0
    %933 = vmatpush1.msra.mxu0 %v219
    %934 = vmatprep.subr.mxu0 0.0
    %935 = vmatpush1.msra.mxu0 %v220
    %936 = vmatprep.subr.mxu0 0.0
    %937 = vmatpush1.msra.mxu0 %v221
    %938 = vmatprep.subr.mxu0 0.0
    %939 = vmatpush1.msra.mxu0 %v222
    %940 = vmatprep.subr.mxu0 0.0
    %941 = vmatpush1.msra.mxu0 %v223
    %942 = vmatprep.subr.mxu0 0.0
    %943 = vmatpush1.msra.mxu0 %v224
    %944 = vmatprep.subr.mxu0 0.0
    %945 = vmatpush1.msra.mxu0 %v225
    %946 = vmatprep.subr.mxu0 0.0
    %947 = vmatpush1.msra.mxu0 %v226
    %948 = vmatprep.subr.mxu0 0.0
    %949 = vmatpush1.msra.mxu0 %v227
    %950 = vmatprep.subr.mxu0 0.0
    %951 = vmatpush1.msra.mxu0 %v228
    %952 = vmatprep.subr.mxu0 0.0
    %953 = vmatpush1.msra.mxu0 %v229
    %954 = vmatprep.subr.mxu0 0.0
    %955 = vmatpush1.msra.mxu0 %v230
    %956 = vmatprep.subr.mxu0 0.0
    %957 = vmatpush1.msra.mxu0 %v231
    %958 = vmatprep.subr.mxu0 0.0
    %959 = vmatpush1.msra.mxu0 %v232
    %960 = vmatprep.subr.mxu0 0.0
    %961 = vmatpush1.msra.mxu0 %v233
    %962 = vmatprep.subr.mxu0 0.0
    %963 = vmatpush1.msra.mxu0 %v234
    %964 = vmatprep.subr.mxu0 0.0
    %965 = vmatpush1.msra.mxu0 %v235
    %966 = vmatprep.subr.mxu0 0.0
    %967 = vmatpush1.msra.mxu0 %v236
    %968 = vmatprep.mubr.f32.mxu0 %v481
    %969 = vmatmul.mubr.f32.gmra.mrb[0].mxu0 %v477
    %v970 = vpop.f32.mrb[0].mxu0
    %v971 = vadd.f32 %v901, %v970
    %v972 = vpop.f32.mrb[0].mxu0
    %973 = vdwg.mxu0
    %974 = vmatprep.subr.mxu0 0.0
    %975 = vmatpush1.msra.mxu0 %v237
    %976 = vmatprep.subr.mxu0 0.0
    %977 = vmatpush1.msra.mxu0 %v238
    %978 = vmatprep.subr.mxu0 0.0
    %979 = vmatpush1.msra.mxu0 %v239
    %980 = vmatprep.subr.mxu0 0.0
    %981 = vmatpush1.msra.mxu0 %v240
    %982 = vmatprep.subr.mxu0 0.0
    %983 = vmatpush1.msra.mxu0 %v241
    %984 = vmatprep.subr.mxu0 0.0
    %985 = vmatpush1.msra.mxu0 %v242
    %986 = vmatprep.subr.mxu0 0.0
    %987 = vmatpush1.msra.mxu0 %v243
    %988 = vmatprep.subr.mxu0 0.0
    %989 = vmatpush1.msra.mxu0 %v244
    %990 = vmatprep.subr.mxu0 0.0
    %991 = vmatpush1.msra.mxu0 %v245
    %992 = vmatprep.subr.mxu0 0.0
    %993 = vmatpush1.msra.mxu0 %v246
    %994 = vmatprep.subr.mxu0 0.0
    %995 = vmatpush1.msra.mxu0 %v247
    %996 = vmatprep.subr.mxu0 0.0
    %997 = vmatpush1.msra.mxu0 %v248
    %998 = vmatprep.subr.mxu0 0.0
    %999 = vmatpush1.msra.mxu0 %v249
    %1000 = vmatprep.subr.mxu0 0.0
    %1001 = vmatpush1.msra.mxu0 %v250
    %1002 = vmatprep.subr.mxu0 0.0
    %1003 = vmatpush1.msra.mxu0 %v251
    %1004 = vmatprep.subr.mxu0 0.0
    %1005 = vmatpush1.msra.mxu0 %v252
    %1006 = vmatprep.subr.mxu0 0.0
    %1007 = vmatpush1.msra.mxu0 %v253
    %1008 = vmatprep.subr.mxu0 0.0
    %1009 = vmatpush1.msra.mxu0 %v254
    %1010 = vmatprep.subr.mxu0 0.0
    %1011 = vmatpush1.msra.mxu0 %v255
    %1012 = vmatprep.subr.mxu0 0.0
    %1013 = vmatpush1.msra.mxu0 %v256
    %1014 = vmatprep.subr.mxu0 0.0
    %1015 = vmatpush1.msra.mxu0 %v257
    %1016 = vmatprep.subr.mxu0 0.0
    %1017 = vmatpush1.msra.mxu0 %v258
    %1018 = vmatprep.subr.mxu0 0.0
    %1019 = vmatpush1.msra.mxu0 %v259
    %1020 = vmatprep.subr.mxu0 0.0
    %1021 = vmatpush1.msra.mxu0 %v260
    %1022 = vmatprep.subr.mxu0 0.0
    %1023 = vmatpush1.msra.mxu0 %v261
    %1024 = vmatprep.subr.mxu0 0.0
    %1025 = vmatpush1.msra.mxu0 %v262
    %1026 = vmatprep.subr.mxu0 0.0
    %1027 = vmatpush1.msra.mxu0 %v263
    %1028 = vmatprep.subr.mxu0 0.0
    %1029 = vmatpush1.msra.mxu0 %v264
    %1030 = vmatprep.subr.mxu0 0.0
    %1031 = vmatpush1.msra.mxu0 %v265
    %1032 = vmatprep.subr.mxu0 0.0
    %1033 = vmatpush1.msra.mxu0 %v266
    %1034 = vmatprep.subr.mxu0 0.0
    %1035 = vmatpush1.msra.mxu0 %v267
    %1036 = vmatprep.subr.mxu0 0.0
    %1037 = vmatpush1.msra.mxu0 %v268
    %1038 = vmatprep.mubr.f32.mxu0 %v489
    %1039 = vmatmul.mubr.f32.gmra.mrb[0].mxu0 %v485
    %v1040 = vpop.f32.mrb[0].mxu0
    %v1041 = vadd.f32 %v971, %v1040
    %v1042 = vpop.f32.mrb[0].mxu0
    %1043 = vdwg.mxu0
    %1044 = vmatprep.subr.mxu0 0.0
    %1045 = vmatpush1.msra.mxu0 %v269
    %1046 = vmatprep.subr.mxu0 0.0
    %1047 = vmatpush1.msra.mxu0 %v270
    %1048 = vmatprep.subr.mxu0 0.0
    %1049 = vmatpush1.msra.mxu0 %v271
    %1050 = vmatprep.subr.mxu0 0.0
    %1051 = vmatpush1.msra.mxu0 %v272
    %1052 = vmatprep.subr.mxu0 0.0
    %1053 = vmatpush1.msra.mxu0 %v273
    %1054 = vmatprep.subr.mxu0 0.0
    %1055 = vmatpush1.msra.mxu0 %v274
    %1056 = vmatprep.subr.mxu0 0.0
    %1057 = vmatpush1.msra.mxu0 %v275
    %1058 = vmatprep.subr.mxu0 0.0
    %1059 = vmatpush1.msra.mxu0 %v276
    %1060 = vmatprep.subr.mxu0 0.0
    %1061 = vmatpush1.msra.mxu0 %v277
    %1062 = vmatprep.subr.mxu0 0.0
    %1063 = vmatpush1.msra.mxu0 %v278
    %1064 = vmatprep.subr.mxu0 0.0
    %1065 = vmatpush1.msra.mxu0 %v279
    %1066 = vmatprep.subr.mxu0 0.0
    %1067 = vmatpush1.msra.mxu0 %v280
    %1068 = vmatprep.subr.mxu0 0.0
    %1069 = vmatpush1.msra.mxu0 %v281
    %1070 = vmatprep.subr.mxu0 0.0
    %1071 = vmatpush1.msra.mxu0 %v282
    %1072 = vmatprep.subr.mxu0 0.0
    %1073 = vmatpush1.msra.mxu0 %v283
    %1074 = vmatprep.subr.mxu0 0.0
    %1075 = vmatpush1.msra.mxu0 %v284
    %1076 = vmatprep.subr.mxu0 0.0
    %1077 = vmatpush1.msra.mxu0 %v285
    %1078 = vmatprep.subr.mxu0 0.0
    %1079 = vmatpush1.msra.mxu0 %v286
    %1080 = vmatprep.subr.mxu0 0.0
    %1081 = vmatpush1.msra.mxu0 %v287
    %1082 = vmatprep.subr.mxu0 0.0
    %1083 = vmatpush1.msra.mxu0 %v288
    %1084 = vmatprep.subr.mxu0 0.0
    %1085 = vmatpush1.msra.mxu0 %v289
    %1086 = vmatprep.subr.mxu0 0.0
    %1087 = vmatpush1.msra.mxu0 %v290
    %1088 = vmatprep.subr.mxu0 0.0
    %1089 = vmatpush1.msra.mxu0 %v291
    %1090 = vmatprep.subr.mxu0 0.0
    %1091 = vmatpush1.msra.mxu0 %v292
    %1092 = vmatprep.subr.mxu0 0.0
    %1093 = vmatpush1.msra.mxu0 %v293
    %1094 = vmatprep.subr.mxu0 0.0
    %1095 = vmatpush1.msra.mxu0 %v294
    %1096 = vmatprep.subr.mxu0 0.0
    %1097 = vmatpush1.msra.mxu0 %v295
    %1098 = vmatprep.subr.mxu0 0.0
    %1099 = vmatpush1.msra.mxu0 %v296
    %1100 = vmatprep.subr.mxu0 0.0
    %1101 = vmatpush1.msra.mxu0 %v297
    %1102 = vmatprep.subr.mxu0 0.0
    %1103 = vmatpush1.msra.mxu0 %v298
    %1104 = vmatprep.subr.mxu0 0.0
    %1105 = vmatpush1.msra.mxu0 %v299
    %1106 = vmatprep.subr.mxu0 0.0
    %1107 = vmatpush1.msra.mxu0 %v300
    %1108 = vmatprep.mubr.f32.mxu0 %v497
    %1109 = vmatmul.mubr.f32.gmra.mrb[0].mxu0 %v493
    %v1110 = vpop.f32.mrb[0].mxu0
    %v1111 = vadd.f32 %v1041, %v1110
    %v1112 = vpop.f32.mrb[0].mxu0
    %1113 = vdwg.mxu0
    %1114 = vmatprep.subr.mxu0 0.0
    %1115 = vmatpush1.msra.mxu0 %v301
    %1116 = vmatprep.subr.mxu0 0.0
    %1117 = vmatpush1.msra.mxu0 %v302
    %1118 = vmatprep.subr.mxu0 0.0
    %1119 = vmatpush1.msra.mxu0 %v303
    %1120 = vmatprep.subr.mxu0 0.0
    %1121 = vmatpush1.msra.mxu0 %v304
    %1122 = vmatprep.subr.mxu0 0.0
    %1123 = vmatpush1.msra.mxu0 %v305
    %1124 = vmatprep.subr.mxu0 0.0
    %1125 = vmatpush1.msra.mxu0 %v306
    %1126 = vmatprep.subr.mxu0 0.0
    %1127 = vmatpush1.msra.mxu0 %v307
    %1128 = vmatprep.subr.mxu0 0.0
    %1129 = vmatpush1.msra.mxu0 %v308
    %1130 = vmatprep.subr.mxu0 0.0
    %1131 = vmatpush1.msra.mxu0 %v309
    %1132 = vmatprep.subr.mxu0 0.0
    %1133 = vmatpush1.msra.mxu0 %v310
    %1134 = vmatprep.subr.mxu0 0.0
    %1135 = vmatpush1.msra.mxu0 %v311
    %1136 = vmatprep.subr.mxu0 0.0
    %1137 = vmatpush1.msra.mxu0 %v312
    %1138 = vmatprep.subr.mxu0 0.0
    %1139 = vmatpush1.msra.mxu0 %v313
    %1140 = vmatprep.subr.mxu0 0.0
    %1141 = vmatpush1.msra.mxu0 %v314
    %1142 = vmatprep.subr.mxu0 0.0
    %1143 = vmatpush1.msra.mxu0 %v315
    %1144 = vmatprep.subr.mxu0 0.0
    %1145 = vmatpush1.msra.mxu0 %v316
    %1146 = vmatprep.subr.mxu0 0.0
    %1147 = vmatpush1.msra.mxu0 %v317
    %1148 = vmatprep.subr.mxu0 0.0
    %1149 = vmatpush1.msra.mxu0 %v318
    %1150 = vmatprep.subr.mxu0 0.0
    %1151 = vmatpush1.msra.mxu0 %v319
    %1152 = vmatprep.subr.mxu0 0.0
    %1153 = vmatpush1.msra.mxu0 %v320
    %1154 = vmatprep.subr.mxu0 0.0
    %1155 = vmatpush1.msra.mxu0 %v321
    %1156 = vmatprep.subr.mxu0 0.0
    %1157 = vmatpush1.msra.mxu0 %v322
    %1158 = vmatprep.subr.mxu0 0.0
    %1159 = vmatpush1.msra.mxu0 %v323
    %1160 = vmatprep.subr.mxu0 0.0
    %1161 = vmatpush1.msra.mxu0 %v324
    %1162 = vmatprep.subr.mxu0 0.0
    %1163 = vmatpush1.msra.mxu0 %v325
    %1164 = vmatprep.subr.mxu0 0.0
    %1165 = vmatpush1.msra.mxu0 %v326
    %1166 = vmatprep.subr.mxu0 0.0
    %1167 = vmatpush1.msra.mxu0 %v327
    %1168 = vmatprep.subr.mxu0 0.0
    %1169 = vmatpush1.msra.mxu0 %v328
    %1170 = vmatprep.subr.mxu0 0.0
    %1171 = vmatpush1.msra.mxu0 %v329
    %1172 = vmatprep.subr.mxu0 0.0
    %1173 = vmatpush1.msra.mxu0 %v330
    %1174 = vmatprep.subr.mxu0 0.0
    %1175 = vmatpush1.msra.mxu0 %v331
    %1176 = vmatprep.subr.mxu0 0.0
    %1177 = vmatpush1.msra.mxu0 %v332
    %1178 = vmatprep.mubr.f32.mxu0 %v505
    %1179 = vmatmul.mubr.f32.gmra.mrb[0].mxu0 %v501
    %v1180 = vpop.f32.mrb[0].mxu0
    %v1181 = vadd.f32 %v1111, %v1180
    %v1182 = vpop.f32.mrb[0].mxu0
    %1183 = vdwg.mxu0
    %1184 = vmatprep.subr.mxu0 0.0
    %1185 = vmatpush1.msra.mxu0 %v333
    %1186 = vmatprep.subr.mxu0 0.0
    %1187 = vmatpush1.msra.mxu0 %v334
    %1188 = vmatprep.subr.mxu0 0.0
    %1189 = vmatpush1.msra.mxu0 %v335
    %1190 = vmatprep.subr.mxu0 0.0
    %1191 = vmatpush1.msra.mxu0 %v336
    %1192 = vmatprep.subr.mxu0 0.0
    %1193 = vmatpush1.msra.mxu0 %v337
    %1194 = vmatprep.subr.mxu0 0.0
    %1195 = vmatpush1.msra.mxu0 %v338
    %1196 = vmatprep.subr.mxu0 0.0
    %1197 = vmatpush1.msra.mxu0 %v339
    %1198 = vmatprep.subr.mxu0 0.0
    %1199 = vmatpush1.msra.mxu0 %v340
    %1200 = vmatprep.subr.mxu0 0.0
    %1201 = vmatpush1.msra.mxu0 %v341
    %1202 = vmatprep.subr.mxu0 0.0
    %1203 = vmatpush1.msra.mxu0 %v342
    %1204 = vmatprep.subr.mxu0 0.0
    %1205 = vmatpush1.msra.mxu0 %v343
    %1206 = vmatprep.subr.mxu0 0.0
    %1207 = vmatpush1.msra.mxu0 %v344
    %1208 = vmatprep.subr.mxu0 0.0
    %1209 = vmatpush1.msra.mxu0 %v345
    %1210 = vmatprep.subr.mxu0 0.0
    %1211 = vmatpush1.msra.mxu0 %v346
    %1212 = vmatprep.subr.mxu0 0.0
    %1213 = vmatpush1.msra.mxu0 %v347
    %1214 = vmatprep.subr.mxu0 0.0
    %1215 = vmatpush1.msra.mxu0 %v348
    %1216 = vmatprep.subr.mxu0 0.0
    %1217 = vmatpush1.msra.mxu0 %v349
    %1218 = vmatprep.subr.mxu0 0.0
    %1219 = vmatpush1.msra.mxu0 %v350
    %1220 = vmatprep.subr.mxu0 0.0
    %1221 = vmatpush1.msra.mxu0 %v351
    %1222 = vmatprep.subr.mxu0 0.0
    %1223 = vmatpush1.msra.mxu0 %v352
    %1224 = vmatprep.subr.mxu0 0.0
    %1225 = vmatpush1.msra.mxu0 %v353
    %1226 = vmatprep.subr.mxu0 0.0
    %1227 = vmatpush1.msra.mxu0 %v354
    %1228 = vmatprep.subr.mxu0 0.0
    %1229 = vmatpush1.msra.mxu0 %v355
    %1230 = vmatprep.subr.mxu0 0.0
    %1231 = vmatpush1.msra.mxu0 %v356
    %1232 = vmatprep.subr.mxu0 0.0
    %1233 = vmatpush1.msra.mxu0 %v357
    %1234 = vmatprep.subr.mxu0 0.0
    %1235 = vmatpush1.msra.mxu0 %v358
    %1236 = vmatprep.subr.mxu0 0.0
    %1237 = vmatpush1.msra.mxu0 %v359
    %1238 = vmatprep.subr.mxu0 0.0
    %1239 = vmatpush1.msra.mxu0 %v360
    %1240 = vmatprep.subr.mxu0 0.0
    %1241 = vmatpush1.msra.mxu0 %v361
    %1242 = vmatprep.subr.mxu0 0.0
    %1243 = vmatpush1.msra.mxu0 %v362
    %1244 = vmatprep.subr.mxu0 0.0
    %1245 = vmatpush1.msra.mxu0 %v363
    %1246 = vmatprep.subr.mxu0 0.0
    %1247 = vmatpush1.msra.mxu0 %v364
    %1248 = vmatprep.mubr.f32.mxu0 %v513
    %1249 = vmatmul.mubr.f32.gmra.mrb[0].mxu0 %v509
    %v1250 = vpop.f32.mrb[0].mxu0
    %v1251 = vadd.f32 %v1181, %v1250
    %v1252 = vpop.f32.mrb[0].mxu0
    %1253 = vdwg.mxu0
    %1254 = vmatprep.subr.mxu0 0.0
    %1255 = vmatpush1.msra.mxu0 %v365
    %1256 = vmatprep.subr.mxu0 0.0
    %1257 = vmatpush1.msra.mxu0 %v366
    %1258 = vmatprep.subr.mxu0 0.0
    %1259 = vmatpush1.msra.mxu0 %v367
    %1260 = vmatprep.subr.mxu0 0.0
    %1261 = vmatpush1.msra.mxu0 %v368
    %1262 = vmatprep.subr.mxu0 0.0
    %1263 = vmatpush1.msra.mxu0 %v369
    %1264 = vmatprep.subr.mxu0 0.0
    %1265 = vmatpush1.msra.mxu0 %v370
    %1266 = vmatprep.subr.mxu0 0.0
    %1267 = vmatpush1.msra.mxu0 %v371
    %1268 = vmatprep.subr.mxu0 0.0
    %1269 = vmatpush1.msra.mxu0 %v372
    %1270 = vmatprep.subr.mxu0 0.0
    %1271 = vmatpush1.msra.mxu0 %v373
    %1272 = vmatprep.subr.mxu0 0.0
    %1273 = vmatpush1.msra.mxu0 %v374
    %1274 = vmatprep.subr.mxu0 0.0
    %1275 = vmatpush1.msra.mxu0 %v375
    %1276 = vmatprep.subr.mxu0 0.0
    %1277 = vmatpush1.msra.mxu0 %v376
    %1278 = vmatprep.subr.mxu0 0.0
    %1279 = vmatpush1.msra.mxu0 %v377
    %1280 = vmatprep.subr.mxu0 0.0
    %1281 = vmatpush1.msra.mxu0 %v378
    %1282 = vmatprep.subr.mxu0 0.0
    %1283 = vmatpush1.msra.mxu0 %v379
    %1284 = vmatprep.subr.mxu0 0.0
    %1285 = vmatpush1.msra.mxu0 %v380
    %1286 = vmatprep.subr.mxu0 0.0
    %1287 = vmatpush1.msra.mxu0 %v381
    %1288 = vmatprep.subr.mxu0 0.0
    %1289 = vmatpush1.msra.mxu0 %v382
    %1290 = vmatprep.subr.mxu0 0.0
    %1291 = vmatpush1.msra.mxu0 %v383
    %1292 = vmatprep.subr.mxu0 0.0
    %1293 = vmatpush1.msra.mxu0 %v384
    %1294 = vmatprep.subr.mxu0 0.0
    %1295 = vmatpush1.msra.mxu0 %v385
    %1296 = vmatprep.subr.mxu0 0.0
    %1297 = vmatpush1.msra.mxu0 %v386
    %1298 = vmatprep.subr.mxu0 0.0
    %1299 = vmatpush1.msra.mxu0 %v387
    %1300 = vmatprep.subr.mxu0 0.0
    %1301 = vmatpush1.msra.mxu0 %v388
    %1302 = vmatprep.subr.mxu0 0.0
    %1303 = vmatpush1.msra.mxu0 %v389
    %1304 = vmatprep.subr.mxu0 0.0
    %1305 = vmatpush1.msra.mxu0 %v390
    %1306 = vmatprep.subr.mxu0 0.0
    %1307 = vmatpush1.msra.mxu0 %v391
    %1308 = vmatprep.subr.mxu0 0.0
    %1309 = vmatpush1.msra.mxu0 %v392
    %1310 = vmatprep.subr.mxu0 0.0
    %1311 = vmatpush1.msra.mxu0 %v393
    %1312 = vmatprep.subr.mxu0 0.0
    %1313 = vmatpush1.msra.mxu0 %v394
    %1314 = vmatprep.subr.mxu0 0.0
    %1315 = vmatpush1.msra.mxu0 %v395
    %1316 = vmatprep.subr.mxu0 0.0
    %1317 = vmatpush1.msra.mxu0 %v396
    %1318 = vmatprep.mubr.f32.mxu0 %v521
    %1319 = vmatmul.mubr.f32.gmra.mrb[0].mxu0 %v517
    %v1320 = vpop.f32.mrb[0].mxu0
    %v1321 = vadd.f32 %v1251, %v1320
    %v1322 = vpop.f32.mrb[0].mxu0
    %1323 = vdwg.mxu0
    %1324 = vmatprep.subr.mxu0 0.0
    %1325 = vmatpush1.msra.mxu0 %v397
    %1326 = vmatprep.subr.mxu0 0.0
    %1327 = vmatpush1.msra.mxu0 %v398
    %1328 = vmatprep.subr.mxu0 0.0
    %1329 = vmatpush1.msra.mxu0 %v399
    %1330 = vmatprep.subr.mxu0 0.0
    %1331 = vmatpush1.msra.mxu0 %v400
    %1332 = vmatprep.subr.mxu0 0.0
    %1333 = vmatpush1.msra.mxu0 %v401
    %1334 = vmatprep.subr.mxu0 0.0
    %1335 = vmatpush1.msra.mxu0 %v402
    %1336 = vmatprep.subr.mxu0 0.0
    %1337 = vmatpush1.msra.mxu0 %v403
    %1338 = vmatprep.subr.mxu0 0.0
    %1339 = vmatpush1.msra.mxu0 %v404
    %1340 = vmatprep.subr.mxu0 0.0
    %1341 = vmatpush1.msra.mxu0 %v405
    %1342 = vmatprep.subr.mxu0 0.0
    %1343 = vmatpush1.msra.mxu0 %v406
    %1344 = vmatprep.subr.mxu0 0.0
    %1345 = vmatpush1.msra.mxu0 %v407
    %1346 = vmatprep.subr.mxu0 0.0
    %1347 = vmatpush1.msra.mxu0 %v408
    %1348 = vmatprep.subr.mxu0 0.0
    %1349 = vmatpush1.msra.mxu0 %v409
    %1350 = vmatprep.subr.mxu0 0.0
    %1351 = vmatpush1.msra.mxu0 %v410
    %1352 = vmatprep.subr.mxu0 0.0
    %1353 = vmatpush1.msra.mxu0 %v411
    %1354 = vmatprep.subr.mxu0 0.0
    %1355 = vmatpush1.msra.mxu0 %v412
    %1356 = vmatprep.subr.mxu0 0.0
    %1357 = vmatpush1.msra.mxu0 %v413
    %1358 = vmatprep.subr.mxu0 0.0
    %1359 = vmatpush1.msra.mxu0 %v414
    %1360 = vmatprep.subr.mxu0 0.0
    %1361 = vmatpush1.msra.mxu0 %v415
    %1362 = vmatprep.subr.mxu0 0.0
    %1363 = vmatpush1.msra.mxu0 %v416
    %1364 = vmatprep.subr.mxu0 0.0
    %1365 = vmatpush1.msra.mxu0 %v417
    %1366 = vmatprep.subr.mxu0 0.0
    %1367 = vmatpush1.msra.mxu0 %v418
    %1368 = vmatprep.subr.mxu0 0.0
    %1369 = vmatpush1.msra.mxu0 %v419
    %1370 = vmatprep.subr.mxu0 0.0
    %1371 = vmatpush1.msra.mxu0 %v420
    %1372 = vmatprep.subr.mxu0 0.0
    %1373 = vmatpush1.msra.mxu0 %v421
    %1374 = vmatprep.subr.mxu0 0.0
    %1375 = vmatpush1.msra.mxu0 %v422
    %1376 = vmatprep.subr.mxu0 0.0
    %1377 = vmatpush1.msra.mxu0 %v423
    %1378 = vmatprep.subr.mxu0 0.0
    %1379 = vmatpush1.msra.mxu0 %v424
    %1380 = vmatprep.subr.mxu0 0.0
    %1381 = vmatpush1.msra.mxu0 %v425
    %1382 = vmatprep.subr.mxu0 0.0
    %1383 = vmatpush1.msra.mxu0 %v426
    %1384 = vmatprep.subr.mxu0 0.0
    %1385 = vmatpush1.msra.mxu0 %v427
    %1386 = vmatprep.subr.mxu0 0.0
    %1387 = vmatpush1.msra.mxu0 %v428
    %1388 = vmatprep.mubr.f32.mxu0 %v529
    %1389 = vmatmul.mubr.f32.gmra.mrb[0].mxu0 %v525
    %v1390 = vpop.f32.mrb[0].mxu0
    %v1391 = vadd.f32 %v1321, %v1390
    %v1392 = vpop.f32.mrb[0].mxu0
    %1393 = vdwg.mxu0
    %1394 = vst [vmem:[#allocation8] sm:$0x1] %v1391
    // Predicated region
    $region22: #{tpu_custom_call.1} parent=1 // pred_check
      _
    $region23: #{tpu_custom_call.1} parent=1 // pred_check_branch
      %1396 = sbr.rel (0) target = $region25
    $region24: #{tpu_custom_call.1} parent=1 // pred_region
      %s1398 = ssub.s32 16, 16
      %1399 = vsyncadd [#allocation5], %s1398
      %s1401 = sshll.u32 [#allocation8], 4
      %s1402 = int_to_ptr.vmem [resolvable:$true] %s1401
      %1404 = dma.vmem_to_hbm [thread:$0]  %s1402, 16, %s3, [#allocation5]
    $region25: #{tpu_custom_call.1} parent=1 // pred_fallthru
      _
    // Predicated region
    $region26: #{tpu_custom_call.1} parent=1 // pred_check
      _
    $region27: #{tpu_custom_call.1} parent=1 // pred_check_branch
      %1406 = sbr.rel (0) target = $region29
    $region28: #{tpu_custom_call.1} parent=1 // pred_region
      %1407 = dma.done [#allocation5], 16
    $region29: #{tpu_custom_call.1} parent=1 // pred_fallthru
      _
    %1408 = vsyncpa [#allocation4], 1
    %1409 = vsyncpa [#allocation7], 1
    %1410 = vsyncpa [#allocation5], 1

</llo_original>
